<compile_context>
chip_gen: v7x
topology: tpu7x:2x2x1
jax: 0.10.0
libtpu: 0.0.40
codegen_flags: <defaults>
</compile_context>

<pallas_src>
import jax
import jax.numpy as jnp
from jax import lax
from jax.experimental import pallas as pl
from jax.experimental.pallas import tpu as pltpu


def _round_up(x: int, m: int) -> int:
    return ((x + m - 1) // m) * m


def _make_loss_kernel(batch_size: int, tile_b: int, sub: int, d: int,
                      num_classes: int):
    B = int(batch_size)
    n_sub = tile_b // sub

    def kernel(pred_ref, target_ref, trans_ref, out_ref):
        i = pl.program_id(0)
        row0 = i * tile_b

        # ---- NLL partial sum (NaN-safe select; masks ragged tail rows) -----
        # NOTE: out-of-range / ignore_index targets contribute 0 (matches
        # F.nll_loss defaults where no ignore_index is present in-batch).
        pred = pred_ref[...]                                   # (tile_b, C)
        tgt = target_ref[...]                                  # (tile_b, 1) i32
        col = lax.broadcasted_iota(jnp.int32, (tile_b, num_classes), 1)
        row = lax.broadcasted_iota(jnp.int32, (tile_b, num_classes), 0) + row0
        valid = (col == tgt) & (row < B)
        picked = jnp.where(valid, pred.astype(jnp.float32), jnp.float32(0.0))
        nll_partial = -jnp.sum(picked)

        # ---- regularizer: max ||A A^T - I||_F^2 over this tile, chunked ----
        rr = lax.broadcasted_iota(jnp.int32, (d, d), 0)        # hoisted (no CSE
        cc = lax.broadcasted_iota(jnp.int32, (d, d), 1)        # of broadcasts)
        eye = jnp.where(rr == cc, jnp.float32(1.0), jnp.float32(0.0))

        def body(s, carry):
            off = pl.multiple_of(s * sub, sub)
            a = trans_ref[pl.ds(off, sub), :, :]               # (sub, d, d)
            gram = jnp.einsum("bij,bkj->bik", a, a,
                              preferred_element_type=jnp.float32)
            diff = gram - eye                                  # fused (G - I)
            fro2 = jnp.sum(diff * diff, axis=2)                # (sub, d)
            fro2 = jnp.sum(fro2, axis=1, keepdims=True)        # (sub, 1)
            gidx = lax.broadcasted_iota(jnp.int32, (sub, 1), 0) + (row0 + off)
            fro2 = jnp.where(gidx < B, fro2, jnp.float32(-jnp.inf))
            return jnp.maximum(carry, jnp.max(fro2))

        fro2_max = lax.fori_loop(0, n_sub, body, jnp.float32(-jnp.inf),
                                 unroll=True)

        # ---- per-block partials, one lane-dense (1,8,128) slab -------------
        oc = lax.broadcasted_iota(jnp.int32, (8, 128), 1)
        out_vec = jnp.where(oc == 0, nll_partial,
                            jnp.where(oc == 1, fro2_max, jnp.float32(0.0)))
        out_ref[...] = out_vec[None].astype(out_ref.dtype)

    return kernel


def get_loss_pallas(pred, target, trans_feat, mat_diff_loss_scale=0.001,
                    tile_b=None):
    """pred: (B, C) log-probs, target: (B,) int, trans_feat: (B, D, D)."""
    B, C = pred.shape
    D = trans_feat.shape[-1]
    target2d = target.astype(jnp.int32).reshape(B, 1)

    lane = 128
    trans_isize = jnp.dtype(trans_feat.dtype).itemsize
    pred_isize = jnp.dtype(pred.dtype).itemsize

    if tile_b is None:
        # Double-buffered trans tile (last dim lane-padded D->128) capped at
        # ~8 MiB so the total footprint fits the smallest scoped-VMEM default
        # (v5e 16 MiB); f32 D=64 -> tile_b=128, bf16 -> 256.
        per_row = _round_up(D, 8) * _round_up(D, lane) * trans_isize * 2
        tile_b = (8 * 1024 * 1024) // max(per_row, 1)
    tile_b = int(max(8, min(tile_b, _round_up(B, 8))))
    tile_b = (tile_b // 8) * 8                    # sublane-aligned batch tile

    sub = 16 if tile_b % 16 == 0 else 8           # regularizer chunk size
    num_blocks = pl.cdiv(B, tile_b)               # ragged tail masked in-kernel

    # --- explicit VMEM accounting (lane-padded), used for vmem_limit_bytes ---
    trans_blk = tile_b * _round_up(D, 8) * _round_up(D, lane) * trans_isize
    pred_blk = _round_up(tile_b, 8) * _round_up(C, lane) * pred_isize
    tgt_blk = _round_up(tile_b, 8) * lane * 4
    out_blk = 8 * lane * 4
    temps = 4 * sub * _round_up(D, 8) * _round_up(D, lane) * 4   # gram/diff/sq
    est = 2 * (trans_blk + pred_blk + tgt_blk + out_blk) + temps
    vmem_limit = int(min(max(est * 5 // 4, 16 << 20), 32 << 20))

    kernel = _make_loss_kernel(B, tile_b, sub, D, C)
    cost = pl.CostEstimate(
        flops=2 * B * D * D * D + 4 * B * D * D + 2 * B * C,
        transcendentals=0,
        bytes_accessed=(B * D * D * trans_isize + B * C * pred_isize + B * 4
                        + num_blocks * 8 * 128 * 4),
    )

    parts = pl.pallas_call(
        kernel,
        out_shape=jax.ShapeDtypeStruct((num_blocks, 8, 128), jnp.float32),
        grid_spec=pltpu.PrefetchScalarGridSpec(
            num_scalar_prefetch=0,
            grid=(num_blocks,),
            in_specs=[
                pl.BlockSpec((tile_b, C), lambda i: (i, 0)),        # pred
                pl.BlockSpec((tile_b, 1), lambda i: (i, 0)),        # target
                pl.BlockSpec((tile_b, D, D), lambda i: (i, 0, 0)),  # trans
            ],
            out_specs=pl.BlockSpec((1, 8, 128), lambda i: (i, 0, 0)),
        ),
        compiler_params=pltpu.CompilerParams(
            dimension_semantics=("parallel",),    # megacore-shardable on v7x
            vmem_limit_bytes=vmem_limit,
        ),
        cost_estimate=cost,
    )(pred, target2d, trans_feat)

    # Tiny epilogue in XLA: mean, max, single sqrt, scale.
    nll = jnp.sum(parts[:, 0, 0]) / jnp.float32(B)
    fro = jnp.sqrt(jnp.maximum(jnp.max(parts[:, 0, 1]), jnp.float32(0.0)))
    return nll + fro * jnp.float32(mat_diff_loss_scale)


def get_loss_reference(pred, target, trans_feat, mat_diff_loss_scale=0.001):
    """Pure-JAX reference mirroring the PyTorch module (direct eye/diff form)."""
    B = pred.shape[0]
    nll = -jnp.mean(pred[jnp.arange(B), target])
    d = trans_feat.shape[1]
    gram = jnp.einsum("bij,bkj->bik", trans_feat, trans_feat)
    diff = gram - jnp.eye(d, dtype=jnp.float32)[None]
    fro = jnp.sqrt(jnp.sum(diff * diff, axis=(1, 2)))
    return nll + jnp.max(fro) * mat_diff_loss_scale


if __name__ == "__main__":
    key = jax.random.PRNGKey(0)
    k1, k2, k3 = jax.random.split(key, 3)

    C, D = 16, 64                       # num classes, feature-transform dim

    # Case 1: B divisible by tile (grid=(2,), exercises parallel partials).
    B = 16
    logits = jax.random.normal(k1, (B, C), dtype=jnp.float32)
    pred = jax.nn.log_softmax(logits, axis=-1)
    target = jax.random.randint(k2, (B,), 0, C, dtype=jnp.int32)
    trans_feat = jax.random.normal(k3, (B, D, D), dtype=jnp.float32) * 0.1

    total = jax.block_until_ready(
        get_loss_pallas(pred, target, trans_feat, 0.001, tile_b=8))
    ref = get_loss_reference(pred, target, trans_feat, 0.001)
    assert jnp.allclose(total, ref, rtol=1e-5, atol=1e-5), (total, ref)

    # Case 2: ragged tail (B=20, tile_b=8 -> grid=(3,), in-kernel row mask).
    B2 = 20
    k4, k5, k6 = jax.random.split(jax.random.PRNGKey(1), 3)
    logits2 = jax.random.normal(k4, (B2, C), dtype=jnp.float32)
    pred2 = jax.nn.log_softmax(logits2, axis=-1)
    target2 = jax.random.randint(k5, (B2,), 0, C, dtype=jnp.int32)
    trans2 = jax.random.normal(k6, (B2, D, D), dtype=jnp.float32) * 0.1

    total2 = jax.block_until_ready(
        get_loss_pallas(pred2, target2, trans2, 0.001, tile_b=8))
    ref2 = get_loss_reference(pred2, target2, trans2, 0.001)
    assert jnp.allclose(total2, ref2, rtol=1e-5, atol=1e-5), (total2, ref2)

    print("KERNEL_OK")
</pallas_src>

<mosaic_0001>
module attributes {stable_mosaic.version = 11 : i64} {
  func.func @kernel(%arg0: i32, %arg1: memref<8x16xf32, #tpu.memory_space<vmem>>, %arg2: memref<8x1xi32, #tpu.memory_space<vmem>>, %arg3: memref<8x64x64xf32, #tpu.memory_space<vmem>>, %arg4: memref<1x8x128xf32, #tpu.memory_space<vmem>>) attributes {dimension_semantics = [#tpu.dimension_semantics<parallel>], iteration_bounds = array<i64: 2>, scalar_prefetch = 0 : i64, scratch_operands = 0 : i64, tpu.core_type = #tpu.core_type<tc>, window_params = [{transform_indices = @transform_0, window_bounds = array<i64: 8, 16>}, {transform_indices = @transform_1, window_bounds = array<i64: 8, 1>}, {transform_indices = @transform_2, window_bounds = array<i64: 8, 64, 64>}, {transform_indices = @transform_3, window_bounds = array<i64: 1, 8, 128>}]} {
    %c8_i32 = arith.constant 8 : i32
    %0 = arith.muli %arg0, %c8_i32 : i32
    %c0 = arith.constant 0 : index
    %c0_0 = arith.constant 0 : index
    %1 = vector.load %arg1[%c0, %c0_0] : memref<8x16xf32, #tpu.memory_space<vmem>>, vector<8x16xf32>
    %c0_1 = arith.constant 0 : index
    %c0_2 = arith.constant 0 : index
    %2 = vector.load %arg2[%c0_1, %c0_2] : memref<8x1xi32, #tpu.memory_space<vmem>>, vector<8x1xi32>
    %3 = tpu.iota {dimensions = array<i32: 1>} : vector<8x16xi32>
    %4 = tpu.iota {dimensions = array<i32: 0>} : vector<8x16xi32>
    %5 = vector.broadcast %0 : i32 to vector<8x16xi32>
    %6 = arith.addi %4, %5 : vector<8x16xi32>
    %7 = vector.broadcast %2 : vector<8x1xi32> to vector<8x16xi32>
    %8 = arith.cmpi eq, %3, %7 : vector<8x16xi32>
    %c16_i32 = arith.constant 16 : i32
    %9 = vector.broadcast %c16_i32 : i32 to vector<8x16xi32>
    %10 = arith.cmpi slt, %6, %9 : vector<8x16xi32>
    %11 = arith.andi %8, %10 : vector<8x16xi1>
    %cst = arith.constant 0.000000e+00 : f32
    %12 = vector.broadcast %cst : f32 to vector<8x16xf32>
    %13 = arith.select %11, %1, %12 : vector<8x16xi1>, vector<8x16xf32>
    %14 = vector.shape_cast %13 : vector<8x16xf32> to vector<1x8x16xf32>
    %cst_3 = arith.constant dense<0.000000e+00> : vector<1xf32>
    %15 = vector.multi_reduction <add>, %14, %cst_3 [1, 2] : vector<1x8x16xf32> to vector<1xf32>
    %16 = vector.shape_cast %15 : vector<1xf32> to vector<1x1x1xf32>
    %17 = vector.extract %16[0, 0, 0] : f32 from vector<1x1x1xf32>
    %cst_4 = arith.constant 0.000000e+00 : f32
    %18 = arith.subf %cst_4, %17 : f32
    %19 = tpu.iota {dimensions = array<i32: 0>} : vector<64x64xi32>
    %20 = tpu.iota {dimensions = array<i32: 1>} : vector<64x64xi32>
    %21 = arith.cmpi eq, %19, %20 : vector<64x64xi32>
    %cst_5 = arith.constant 1.000000e+00 : f32
    %cst_6 = arith.constant 0.000000e+00 : f32
    %22 = vector.broadcast %cst_5 : f32 to vector<64x64xf32>
    %23 = vector.broadcast %cst_6 : f32 to vector<64x64xf32>
    %24 = arith.select %21, %22, %23 : vector<64x64xi1>, vector<64x64xf32>
    %cst_7 = arith.constant 0xFF800000 : f32
    %c0_i32 = arith.constant 0 : i32
    %c8_i32_8 = arith.constant 8 : i32
    %25 = arith.muli %c0_i32, %c8_i32_8 : i32
    %26 = tpu.assume_multiple %25, 8 : i32
    %27 = arith.index_cast %26 : i32 to index
    %c0_9 = arith.constant 0 : index
    %c0_10 = arith.constant 0 : index
    %28 = vector.load %arg3[%27, %c0_9, %c0_10] : memref<8x64x64xf32, #tpu.memory_space<vmem>>, vector<8x64x64xf32>
    "tpu.trace_start"() <{level = 10 : i32, message = "bij,bkj->bik"}> : () -> ()
    %cst_11 = arith.constant dense<0.000000e+00> : vector<8x64x64xf32>
    %29 = tpu.matmul %28, %28, %cst_11 {dimension_numbers = #tpu.dot_dimension_numbers<[2], [2], [1], [1], [0, 0, 0, 1, 1, 1], [0], [0]>} : vector<8x64x64xf32>, vector<8x64x64xf32>, vector<8x64x64xf32> -> vector<8x64x64xf32>
    "tpu.trace_stop"() : () -> ()
    %30 = vector.shape_cast %24 : vector<64x64xf32> to vector<1x64x64xf32>
    %31 = vector.broadcast %30 : vector<1x64x64xf32> to vector<8x64x64xf32>
    %32 = arith.subf %29, %31 : vector<8x64x64xf32>
    %33 = arith.mulf %32, %32 : vector<8x64x64xf32>
    %cst_12 = arith.constant dense<0.000000e+00> : vector<8x64xf32>
    %34 = vector.multi_reduction <add>, %33, %cst_12 [2] : vector<8x64x64xf32> to vector<8x64xf32>
    %cst_13 = arith.constant dense<0.000000e+00> : vector<8xf32>
    %35 = vector.multi_reduction <add>, %34, %cst_13 [1] : vector<8x64xf32> to vector<8xf32>
    %36 = vector.shape_cast %35 : vector<8xf32> to vector<8x1xf32>
    %37 = tpu.iota {dimensions = array<i32: 0>} : vector<8x1xi32>
    %38 = arith.addi %0, %26 : i32
    %39 = vector.broadcast %38 : i32 to vector<8x1xi32>
    %40 = arith.addi %37, %39 : vector<8x1xi32>
    %c16_i32_14 = arith.constant 16 : i32
    %41 = vector.broadcast %c16_i32_14 : i32 to vector<8x1xi32>
    %42 = arith.cmpi slt, %40, %41 : vector<8x1xi32>
    %cst_15 = arith.constant 0xFF800000 : f32
    %43 = vector.broadcast %cst_15 : f32 to vector<8x1xf32>
    %44 = arith.select %42, %36, %43 : vector<8x1xi1>, vector<8x1xf32>
    %45 = vector.shape_cast %44 : vector<8x1xf32> to vector<1x8x1xf32>
    %cst_16 = arith.constant dense<0xFF800000> : vector<1xf32>
    %46 = vector.multi_reduction <maximumf>, %45, %cst_16 [1, 2] : vector<1x8x1xf32> to vector<1xf32>
    %47 = vector.shape_cast %46 : vector<1xf32> to vector<1x1x1xf32>
    %48 = vector.extract %47[0, 0, 0] : f32 from vector<1x1x1xf32>
    %49 = arith.maximumf %cst_7, %48 : f32
    %c1_i32 = arith.constant 1 : i32
    %50 = tpu.iota {dimensions = array<i32: 1>} : vector<8x128xi32>
    %c0_i32_17 = arith.constant 0 : i32
    %51 = vector.broadcast %c0_i32_17 : i32 to vector<8x128xi32>
    %52 = arith.cmpi eq, %50, %51 : vector<8x128xi32>
    %c1_i32_18 = arith.constant 1 : i32
    %53 = vector.broadcast %c1_i32_18 : i32 to vector<8x128xi32>
    %54 = arith.cmpi eq, %50, %53 : vector<8x128xi32>
    %cst_19 = arith.constant 0.000000e+00 : f32
    %55 = vector.broadcast %49 : f32 to vector<8x128xf32>
    %56 = vector.broadcast %cst_19 : f32 to vector<8x128xf32>
    %57 = arith.select %54, %55, %56 : vector<8x128xi1>, vector<8x128xf32>
    %58 = vector.broadcast %18 : f32 to vector<8x128xf32>
    %59 = arith.select %52, %58, %57 : vector<8x128xi1>, vector<8x128xf32>
    %60 = vector.shape_cast %59 : vector<8x128xf32> to vector<1x8x128xf32>
    %c0_20 = arith.constant 0 : index
    %c0_21 = arith.constant 0 : index
    %c0_22 = arith.constant 0 : index
    %61 = vector.load %arg4[%c0_20, %c0_21, %c0_22] : memref<1x8x128xf32, #tpu.memory_space<vmem>>, vector<1x8x128xf32>
    tpu.vector_store %arg4[%c0_20, %c0_21, %c0_22], %60 {strides = array<i32>} : memref<1x8x128xf32, #tpu.memory_space<vmem>>, vector<1x8x128xf32>,
    return
  }
  func.func @transform_0(%arg0: i32) -> (i32, i32) {
    %c0_i32 = arith.constant 0 : i32
    %c0_i32_0 = arith.constant 0 : i32
    return %arg0, %c0_i32 : i32, i32
  }
  func.func @transform_1(%arg0: i32) -> (i32, i32) {
    %c0_i32 = arith.constant 0 : i32
    %c0_i32_0 = arith.constant 0 : i32
    return %arg0, %c0_i32 : i32, i32
  }
  func.func @transform_2(%arg0: i32) -> (i32, i32, i32) {
    %c0_i32 = arith.constant 0 : i32
    %c0_i32_0 = arith.constant 0 : i32
    %c0_i32_1 = arith.constant 0 : i32
    return %arg0, %c0_i32, %c0_i32_0 : i32, i32, i32
  }
  func.func @transform_3(%arg0: i32) -> (i32, i32, i32) {
    %c0_i32 = arith.constant 0 : i32
    %c0_i32_0 = arith.constant 0 : i32
    %c0_i32_1 = arith.constant 0 : i32
    return %arg0, %c0_i32, %c0_i32_0 : i32, i32, i32
  }
}

</mosaic_0001>

<llo_original>
// kernel: tpu_custom_call.1
$region0: #{tpu_custom_call.1}
  #allocation0 [shape = 'u32[]', space=smem, size = 0x4, offset = 0x4, fixed_abs, tag = 'smem constant byte address 0x4 - core index']
  #allocation1 [shape = 'u32[144,128]{1,0:T(1,128)}', space=vmem, size = 0x12000, scoped, tag = 'internal scratch']
  %s0 = inlined_call_operand.vmem [shape: f32[16,16], index: 0, kind: input, shape index: {}]
  %s1 = inlined_call_operand.vmem [shape: s32[16,1], index: 1, kind: input, shape index: {}]
  %s2 = inlined_call_operand.hbm [shape: f32[16,64,64], index: 2, kind: input, shape index: {}]
  %s3 = inlined_call_operand.hbm [shape: f32[2,8,128], index: 3, kind: output, shape index: {}]
  %s4 = sld [smem:[#allocation0]]
  $region49: #{tpu_custom_call.1} parent=0
    _
  %s6 = ssub.s32 1, %s4
  %s7 = scalar_select 0, %s6, %s4
  $region1: #{tpu_custom_call.1} parent=0
    #allocation2 [shape = 'u8[524288]{0}', space=vmem, size = 0x80000, scoped, tag = 'input window, operand 2']
    #allocation3 [shape = 's32[2]{0}', space=sflag, size = 0x8, scoped, tag = 'scoped memory for tpu_custom_call.1']
    #allocation4 [shape = 's32[2]{0}', space=sflag, size = 0x8, scoped, tag = 'scoped memory for tpu_custom_call.1']
    #allocation5 [shape = 'u8[8192]{0}', space=vmem, size = 0x2000, scoped, tag = 'output window, operand 0']
    %8 = vsyncpa [#allocation3], 0
    %s9 = scalar_lea.sflag [#allocation3], 1
    %10 = vsyncpa %s9, 0
    %11 = vsyncpa [#allocation4], 0
    %s12 = scalar_lea.sflag [#allocation4], 1
    %13 = vsyncpa %s12, 0
    loop: start=0, step=1, limit=4
    $region2: #{tpu_custom_call.1} parent=1 // loop_pre_header
      _
    $region3: #{tpu_custom_call.1} parent=1 // loop_header
      %s15 = sphi 0, %s19
      %p16 = scmp.ge.s32.totalorder %s15, 4
      %s25 = sphi 0, %s27
      %s28 = sphi 0, %s25
      %s29 = sphi 0, %s28
      %s45 = sphi 0, %s29
      %s51 = sphi 0, %s53
      %s54 = sphi 0, %s51
      %s55 = sphi 0, %s54
      %s71 = sphi 0, %s55
      %s77 = sphi 0, %s79
      %s80 = sphi 0, %s77
      %s81 = sphi 0, %s80
      %s97 = sphi 0, %s81
      %s103 = sphi 0, %s105
      %s106 = sphi 0, %s103
      %s107 = sphi 0, %s106
      %s123 = sphi 0, %s107
    $region4: #{tpu_custom_call.1} parent=1 // loop_header_branch
      %18 = sbr.rel (%p16) target = $region8
    $region5: #{tpu_custom_call.1} parent=1 // loop_body
      %s20 = ssub.s32 %s15, 1
      %s21 = ssub.s32 %s15, 2
      %s22 = sadd.s32 %s15, 1
      %s23 = ssub.s32 %s15, %s22
      %p24 = scmp.eq.s32.totalorder %s23, 0
      %s26 = sadd.s32 %s25, 1
      %s27 = scalar_select %p24, %s25, %s26
      %p30 = pneg %p24
      %p31 = scmp.eq.s32.totalorder %s15, 1
      %p32 = por %p30, %p31
      %p33 = scmp.ne.s32.totalorder %s25, %s28
      %p34 = scmp.eq.s32.totalorder %s15, 0
      %p35 = por %p33, %p34
      %p36 = scmp.ne.s32.totalorder %s25, %s28
      %p37 = scmp.eq.s32.totalorder %s20, 1
      %p38 = por %p36, %p37
      %p39 = scmp.ne.s32.totalorder %s28, %s29
      %p40 = scmp.eq.s32.totalorder %s20, 0
      %p41 = por %p39, %p40
      %p42 = scmp.ne.s32.totalorder %s28, %s29
      %p43 = scmp.eq.s32.totalorder %s21, 1
      %p44 = por %p42, %p43
      %p46 = scmp.ne.s32.totalorder %s29, %s45
      %p47 = scmp.eq.s32.totalorder %s21, 0
      %p48 = por %p46, %p47
      %s49 = ssub.s32 %s15, %s22
      %p50 = scmp.eq.s32.totalorder %s49, 0
      %s52 = sadd.s32 %s51, 1
      %s53 = scalar_select %p50, %s51, %s52
      %p56 = pneg %p50
      %p57 = scmp.eq.s32.totalorder %s15, 1
      %p58 = por %p56, %p57
      %p59 = scmp.ne.s32.totalorder %s51, %s54
      %p60 = scmp.eq.s32.totalorder %s15, 0
      %p61 = por %p59, %p60
      %p62 = scmp.ne.s32.totalorder %s51, %s54
      %p63 = scmp.eq.s32.totalorder %s20, 1
      %p64 = por %p62, %p63
      %p65 = scmp.ne.s32.totalorder %s54, %s55
      %p66 = scmp.eq.s32.totalorder %s20, 0
      %p67 = por %p65, %p66
      %p68 = scmp.ne.s32.totalorder %s54, %s55
      %p69 = scmp.eq.s32.totalorder %s21, 1
      %p70 = por %p68, %p69
      %p72 = scmp.ne.s32.totalorder %s55, %s71
      %p73 = scmp.eq.s32.totalorder %s21, 0
      %p74 = por %p72, %p73
      %s75 = ssub.s32 %s15, %s22
      %p76 = scmp.eq.s32.totalorder %s75, 0
      %s78 = sadd.s32 %s77, 1
      %s79 = scalar_select %p76, %s77, %s78
      %p82 = pneg %p76
      %p83 = scmp.eq.s32.totalorder %s15, 1
      %p84 = por %p82, %p83
      %p85 = scmp.ne.s32.totalorder %s77, %s80
      %p86 = scmp.eq.s32.totalorder %s15, 0
      %p87 = por %p85, %p86
      %p88 = scmp.ne.s32.totalorder %s77, %s80
      %p89 = scmp.eq.s32.totalorder %s20, 1
      %p90 = por %p88, %p89
      %p91 = scmp.ne.s32.totalorder %s80, %s81
      %p92 = scmp.eq.s32.totalorder %s20, 0
      %p93 = por %p91, %p92
      %p94 = scmp.ne.s32.totalorder %s80, %s81
      %p95 = scmp.eq.s32.totalorder %s21, 1
      %p96 = por %p94, %p95
      %p98 = scmp.ne.s32.totalorder %s81, %s97
      %p99 = scmp.eq.s32.totalorder %s21, 0
      %p100 = por %p98, %p99
      %s101 = ssub.s32 %s15, %s22
      %p102 = scmp.eq.s32.totalorder %s101, 0
      %s104 = sadd.s32 %s103, 1
      %s105 = scalar_select %p102, %s103, %s104
      %p108 = pneg %p102
      %p109 = scmp.eq.s32.totalorder %s15, 1
      %p110 = por %p108, %p109
      %p111 = scmp.ne.s32.totalorder %s103, %s106
      %p112 = scmp.eq.s32.totalorder %s15, 0
      %p113 = por %p111, %p112
      %p114 = scmp.ne.s32.totalorder %s103, %s106
      %p115 = scmp.eq.s32.totalorder %s20, 1
      %p116 = por %p114, %p115
      %p117 = scmp.ne.s32.totalorder %s106, %s107
      %p118 = scmp.eq.s32.totalorder %s20, 0
      %p119 = por %p117, %p118
      %p120 = scmp.ne.s32.totalorder %s106, %s107
      %p121 = scmp.eq.s32.totalorder %s21, 1
      %p122 = por %p120, %p121
      %p124 = scmp.ne.s32.totalorder %s107, %s123
      %p125 = scmp.eq.s32.totalorder %s21, 0
      %p126 = por %p124, %p125
      %p127 = scmp.le.s32.totalorder 1, %s15
      %p128 = scmp.lt.s32.totalorder %s15, 3
      %p129 = pnand %p127, %p128
      %p130 = pneg %p129
      // Predicated region
      $region9: #{tpu_custom_call.1} parent=5 // pred_check
        _
      $region10: #{tpu_custom_call.1} parent=5 // pred_check_branch
        %132 = sbr.rel (%p129) target = $region12
      $region11: #{tpu_custom_call.1} parent=5 // pred_region
        %s133 = ssub.s32 %s15, 1
      $region12: #{tpu_custom_call.1} parent=5 // pred_fallthru
        _
      %p134 = scmp.lt.s32.totalorder %s15, 2
      // Predicated region
      $region13: #{tpu_custom_call.1} parent=5 // pred_check
        %p135 = pneg %p134
      $region14: #{tpu_custom_call.1} parent=5 // pred_check_branch
        %137 = sbr.rel (%p135) target = $region16
      $region15: #{tpu_custom_call.1} parent=5 // pred_region
        // Predicated region
        $region17: #{tpu_custom_call.1} parent=15 // pred_check
          %p138 = pneg %p35
        $region18: #{tpu_custom_call.1} parent=15 // pred_check_branch
          %140 = sbr.rel (%p138) target = $region20
        $region19: #{tpu_custom_call.1} parent=15 // pred_region
          %p141 = scmp.lt.s32.totalorder %s15, 1
          %s142 = scalar_select %p141, %s15, 1
          %s143 = smul.addr %s142, 8
          %s144 = scalar_lea.vmem %s0, %s143
        $region20: #{tpu_custom_call.1} parent=15 // pred_fallthru
          _
        // Predicated region
        $region21: #{tpu_custom_call.1} parent=15 // pred_check
          %p145 = pneg %p61
        $region22: #{tpu_custom_call.1} parent=15 // pred_check_branch
          %147 = sbr.rel (%p145) target = $region24
        $region23: #{tpu_custom_call.1} parent=15 // pred_region
          %p148 = scmp.lt.s32.totalorder %s15, 1
          %s149 = scalar_select %p148, %s15, 1
          %s150 = smul.addr %s149, 8
          %s151 = scalar_lea.vmem %s1, %s150
        $region24: #{tpu_custom_call.1} parent=15 // pred_fallthru
          _
        // Predicated region
        $region25: #{tpu_custom_call.1} parent=15 // pred_check
          %p152 = pneg %p87
        $region26: #{tpu_custom_call.1} parent=15 // pred_check_branch
          %154 = sbr.rel (%p152) target = $region28
        $region27: #{tpu_custom_call.1} parent=15 // pred_region
          %s155 = sand.u32 %s77, 1
          %s156 = scalar_lea.sflag [#allocation3], %s155
          %s157 = sand.u32 %s77, 1
          %s158 = smul.addr %s157, 512
          %s159 = scalar_lea.vmem [#allocation2], %s158
          %s160 = smul.u32 8, %s15
          %s162 = ssub.s32 8192, 8192
          %163 = vsyncadd %s156, %s162
          %s164 = smul.addr %s160, 8
          %s165 = smul.addr %s164, 128
          %s166 = scalar_lea.hbm %s2, %s165
          %s167 = sshll.u32 %s159, 4
          %s168 = int_to_ptr.vmem [resolvable:$true] %s167
          %173 = dma.hbm_to_vmem [thread:$0]  %s166, 8192, %s168, %s156, 128, 128, 8
        $region28: #{tpu_custom_call.1} parent=15 // pred_fallthru
          _
      $region16: #{tpu_custom_call.1} parent=5 // pred_fallthru
        _
      %p174 = scmp.le.s32.totalorder 1, %s15
      %p175 = scmp.lt.s32.totalorder %s15, 3
      %p176 = pnand %p174, %p175
      %p177 = pneg %p176
      // Predicated region
      $region29: #{tpu_custom_call.1} parent=5 // pred_check
        _
      $region30: #{tpu_custom_call.1} parent=5 // pred_check_branch
        %179 = sbr.rel (%p176) target = $region32
      $region31: #{tpu_custom_call.1} parent=5 // pred_region
        %s180 = ssub.s32 %s15, 1
        %s181 = sand.u32 %s80, 1
        %s182 = scalar_lea.sflag [#allocation3], %s181
        %s183 = sand.u32 %s80, 1
        %s184 = smul.addr %s183, 512
        %s185 = scalar_lea.vmem [#allocation2], %s184
        // Predicated region
        $region33: #{tpu_custom_call.1} parent=31 // pred_check
          %p186 = pneg %p93
        $region34: #{tpu_custom_call.1} parent=31 // pred_check_branch
          %188 = sbr.rel (%p186) target = $region36
        $region35: #{tpu_custom_call.1} parent=31 // pred_region
          %189 = dma.done %s182, 8192
        $region36: #{tpu_custom_call.1} parent=31 // pred_fallthru
          _
        %p190 = scmp.lt.s32.totalorder %s20, 1
        %s191 = scalar_select %p190, %s20, 1
        %s192 = smul.addr %s191, 8
        %s193 = scalar_lea.vmem %s0, %s192
        %p194 = pneg %p41
        %p195 = pneg %p38
        %p196 = scmp.lt.s32.totalorder %s20, 1
        %s197 = scalar_select %p196, %s20, 1
        %s198 = smul.addr %s197, 8
        %s199 = scalar_lea.vmem %s1, %s198
        %p200 = pneg %p67
        %p201 = pneg %p64
        %s202 = sand.u32 %s80, 1
        %s203 = scalar_lea.sflag [#allocation3], %s202
        %s204 = sand.u32 %s80, 1
        %s205 = smul.addr %s204, 512
        %s206 = scalar_lea.vmem [#allocation2], %s205
        %p207 = pneg %p93
        %p208 = pneg %p90
        %p209 = pneg %p119
        %p210 = pneg %p116
        %s211 = sand.u32 %s106, 1
        %s212 = scalar_lea.sflag [#allocation4], %s211
        %s213 = sand.u32 %s106, 1
        %s214 = smul.addr %s213, 8
        %s215 = scalar_lea.vmem [#allocation5], %s214
        %p216 = scmp.lt.s32.totalorder %s20, 1
        %s217 = scalar_select %p216, %s20, 1
        %s218 = smul.addr %s217, 8
        %s219 = scalar_lea.vmem %s0, %s218
        %p220 = scmp.lt.s32.totalorder %s20, 1
        %s221 = scalar_select %p220, %s20, 1
        %s222 = smul.addr %s221, 8
        %s223 = scalar_lea.vmem %s1, %s222
        %s224 = smul.u32 8, %s20
        %s225 = smul.u32 %s20, 8
        %v226 = vld [vmem:[%s219] sm:$0xff]
        %v227 = vld [vmem:[%s223] sm:$0xff]
        %v228 = vlaneseq
        %v229 = vand.u32 %v228, 127
        %v230 = vlaneseq
        %v231 = vshrl.u32 %v230, 7
        %v232 = vstv %s225
        %v233 = vadd.s32 %v231, %v232
        %234 = vset.pattern.permute.xlu0 0
        %235 = vperm.xlu0 %234, %v227
        %v236 = vpop.permute.xlu0 %235
        %vm237 = vcmp.eq.s32.totalorder %v229, %v236
        %vm238 = vcmp.lt.s32.totalorder %v233, 16
        %vm239 = vmand %vm237, %vm238
        %v240 = vsel %vm239, %v226, 0.0
        %vm241 = vcmask 130048
        %v242 = vsel %vm241, %v240, 0.0
        %243 = vadd.xlane.f32.xlu0 %v242
        %v244 = vpop.xlane.xlu0 %243
        %v245 = vrot.slane %v244, 4
        %v246 = vadd.f32 %v244, %v245
        %v247 = vrot.slane %v246, 2
        %v248 = vadd.f32 %v246, %v247
        %v249 = vrot.slane %v248, 1
        %v250 = vadd.f32 %v248, %v249
        %s251 = vtos %v250
        %s252 = ssub.f32 0.0, %s251
        %v253 = vadd.s32 %v231, 8
        %v254 = vadd.s32 %v231, 16
        %v255 = vadd.s32 %v231, 24
        %v256 = vadd.s32 %v231, 32
        %v257 = vadd.s32 %v231, 40
        %v258 = vadd.s32 %v231, 48
        %v259 = vadd.s32 %v231, 56
        %vm260 = vcmp.eq.s32.totalorder %v231, %v229
        %vm261 = vcmp.eq.s32.totalorder %v253, %v229
        %vm262 = vcmp.eq.s32.totalorder %v254, %v229
        %vm263 = vcmp.eq.s32.totalorder %v255, %v229
        %vm264 = vcmp.eq.s32.totalorder %v256, %v229
        %vm265 = vcmp.eq.s32.totalorder %v257, %v229
        %vm266 = vcmp.eq.s32.totalorder %v258, %v229
        %vm267 = vcmp.eq.s32.totalorder %v259, %v229
        %v268 = vsel %vm260, 1.0, 0.0
        %v269 = vsel %vm261, 1.0, 0.0
        %v270 = vsel %vm262, 1.0, 0.0
        %v271 = vsel %vm263, 1.0, 0.0
        %v272 = vsel %vm264, 1.0, 0.0
        %v273 = vsel %vm265, 1.0, 0.0
        %v274 = vsel %vm266, 1.0, 0.0
        %v275 = vsel %vm267, 1.0, 0.0
        %s276 = smul.u32 0, 64
        %s277 = scalar_lea.vmem %s185, %s276 [#allocation2]
        %v278 = vld [vmem:[%s277] sm:$0xff]
        %v279 = vld [vmem:[%s277 + $0x8] sm:$0xff]
        %v280 = vld [vmem:[%s277 + $0x10] sm:$0xff]
        %v281 = vld [vmem:[%s277 + $0x18] sm:$0xff]
        %v282 = vld [vmem:[%s277 + $0x20] sm:$0xff]
        %v283 = vld [vmem:[%s277 + $0x28] sm:$0xff]
        %v284 = vld [vmem:[%s277 + $0x30] sm:$0xff]
        %v285 = vld [vmem:[%s277 + $0x38] sm:$0xff]
        %v286 = vld [vmem:[%s277 + $0x40] sm:$0xff]
        %v287 = vld [vmem:[%s277 + $0x48] sm:$0xff]
        %v288 = vld [vmem:[%s277 + $0x50] sm:$0xff]
        %v289 = vld [vmem:[%s277 + $0x58] sm:$0xff]
        %v290 = vld [vmem:[%s277 + $0x60] sm:$0xff]
        %v291 = vld [vmem:[%s277 + $0x68] sm:$0xff]
        %v292 = vld [vmem:[%s277 + $0x70] sm:$0xff]
        %v293 = vld [vmem:[%s277 + $0x78] sm:$0xff]
        %v294 = vld [vmem:[%s277 + $0x80] sm:$0xff]
        %v295 = vld [vmem:[%s277 + $0x88] sm:$0xff]
        %v296 = vld [vmem:[%s277 + $0x90] sm:$0xff]
        %v297 = vld [vmem:[%s277 + $0x98] sm:$0xff]
        %v298 = vld [vmem:[%s277 + $0xa0] sm:$0xff]
        %v299 = vld [vmem:[%s277 + $0xa8] sm:$0xff]
        %v300 = vld [vmem:[%s277 + $0xb0] sm:$0xff]
        %v301 = vld [vmem:[%s277 + $0xb8] sm:$0xff]
        %v302 = vld [vmem:[%s277 + $0xc0] sm:$0xff]
        %v303 = vld [vmem:[%s277 + $0xc8] sm:$0xff]
        %v304 = vld [vmem:[%s277 + $0xd0] sm:$0xff]
        %v305 = vld [vmem:[%s277 + $0xd8] sm:$0xff]
        %v306 = vld [vmem:[%s277 + $0xe0] sm:$0xff]
        %v307 = vld [vmem:[%s277 + $0xe8] sm:$0xff]
        %v308 = vld [vmem:[%s277 + $0xf0] sm:$0xff]
        %v309 = vld [vmem:[%s277 + $0xf8] sm:$0xff]
        %v310 = vld [vmem:[%s277 + $0x100] sm:$0xff]
        %v311 = vld [vmem:[%s277 + $0x108] sm:$0xff]
        %v312 = vld [vmem:[%s277 + $0x110] sm:$0xff]
        %v313 = vld [vmem:[%s277 + $0x118] sm:$0xff]
        %v314 = vld [vmem:[%s277 + $0x120] sm:$0xff]
        %v315 = vld [vmem:[%s277 + $0x128] sm:$0xff]
        %v316 = vld [vmem:[%s277 + $0x130] sm:$0xff]
        %v317 = vld [vmem:[%s277 + $0x138] sm:$0xff]
        %v318 = vld [vmem:[%s277 + $0x140] sm:$0xff]
        %v319 = vld [vmem:[%s277 + $0x148] sm:$0xff]
        %v320 = vld [vmem:[%s277 + $0x150] sm:$0xff]
        %v321 = vld [vmem:[%s277 + $0x158] sm:$0xff]
        %v322 = vld [vmem:[%s277 + $0x160] sm:$0xff]
        %v323 = vld [vmem:[%s277 + $0x168] sm:$0xff]
        %v324 = vld [vmem:[%s277 + $0x170] sm:$0xff]
        %v325 = vld [vmem:[%s277 + $0x178] sm:$0xff]
        %v326 = vld [vmem:[%s277 + $0x180] sm:$0xff]
        %v327 = vld [vmem:[%s277 + $0x188] sm:$0xff]
        %v328 = vld [vmem:[%s277 + $0x190] sm:$0xff]
        %v329 = vld [vmem:[%s277 + $0x198] sm:$0xff]
        %v330 = vld [vmem:[%s277 + $0x1a0] sm:$0xff]
        %v331 = vld [vmem:[%s277 + $0x1a8] sm:$0xff]
        %v332 = vld [vmem:[%s277 + $0x1b0] sm:$0xff]
        %v333 = vld [vmem:[%s277 + $0x1b8] sm:$0xff]
        %v334 = vld [vmem:[%s277 + $0x1c0] sm:$0xff]
        %v335 = vld [vmem:[%s277 + $0x1c8] sm:$0xff]
        %v336 = vld [vmem:[%s277 + $0x1d0] sm:$0xff]
        %v337 = vld [vmem:[%s277 + $0x1d8] sm:$0xff]
        %v338 = vld [vmem:[%s277 + $0x1e0] sm:$0xff]
        %v339 = vld [vmem:[%s277 + $0x1e8] sm:$0xff]
        %v340 = vld [vmem:[%s277 + $0x1f0] sm:$0xff]
        %v341 = vld [vmem:[%s277 + $0x1f8] sm:$0xff]
        %vm342 = vcmask 523264
        %v344 = vsel %vm342, %v278, 0
        %v347 = vsel %vm342, %v279, 0
        %v350 = vsel %vm342, %v280, 0
        %v353 = vsel %vm342, %v281, 0
        %v356 = vsel %vm342, %v282, 0
        %v359 = vsel %vm342, %v283, 0
        %v362 = vsel %vm342, %v284, 0
        %v365 = vsel %vm342, %v285, 0
        %367 = vmatprep.subr.mxu0 0.0
        %368 = vmatpush1.xpose.msra.mxu0 %v344
        %369 = vmatprep.subr.mxu0 0.0
        %370 = vmatpush1.xpose.msra.mxu0 %v347
        %371 = vmatprep.subr.mxu0 0.0
        %372 = vmatpush1.xpose.msra.mxu0 %v350
        %373 = vmatprep.subr.mxu0 0.0
        %374 = vmatpush1.xpose.msra.mxu0 %v353
        %375 = vmatprep.subr.mxu0 0.0
        %376 = vmatpush1.xpose.msra.mxu0 %v356
        %377 = vmatprep.subr.mxu0 0.0
        %378 = vmatpush1.xpose.msra.mxu0 %v359
        %379 = vmatprep.subr.mxu0 0.0
        %380 = vmatpush1.xpose.msra.mxu0 %v362
        %381 = vmatprep.subr.mxu0 0.0
        %382 = vmatpush1.xpose.msra.mxu0 %v365
        %383 = vmatprep.subr.mxu0 0.0
        %384 = vmatpush1.xpose.msra.mxu0 0.0
        %385 = vmatprep.subr.mxu0 0.0
        %386 = vmatpush1.xpose.msra.mxu0 0.0
        %387 = vmatprep.subr.mxu0 0.0
        %388 = vmatpush1.xpose.msra.mxu0 0.0
        %389 = vmatprep.subr.mxu0 0.0
        %390 = vmatpush1.xpose.msra.mxu0 0.0
        %391 = vmatprep.subr.mxu0 0.0
        %392 = vmatpush1.xpose.msra.mxu0 0.0
        %393 = vmatprep.subr.mxu0 0.0
        %394 = vmatpush1.xpose.msra.mxu0 0.0
        %395 = vmatprep.subr.mxu0 0.0
        %396 = vmatpush1.xpose.msra.mxu0 0.0
        %397 = vmatprep.subr.mxu0 0.0
        %398 = vmatpush1.xpose.msra.mxu0 0.0
        %399 = vmatprep.subr.mxu0 0.0
        %400 = vmatpush1.xpose.msra.mxu0 0.0
        %401 = vmatprep.subr.mxu0 0.0
        %402 = vmatpush1.xpose.msra.mxu0 0.0
        %403 = vmatprep.subr.mxu0 0.0
        %404 = vmatpush1.xpose.msra.mxu0 0.0
        %405 = vmatprep.subr.mxu0 0.0
        %406 = vmatpush1.xpose.msra.mxu0 0.0
        %407 = vmatprep.subr.mxu0 0.0
        %408 = vmatpush1.xpose.msra.mxu0 0.0
        %409 = vmatprep.subr.mxu0 0.0
        %410 = vmatpush1.xpose.msra.mxu0 0.0
        %411 = vmatprep.subr.mxu0 0.0
        %412 = vmatpush1.xpose.msra.mxu0 0.0
        %413 = vmatprep.subr.mxu0 0.0
        %414 = vmatpush1.xpose.msra.mxu0 0.0
        %415 = vmatprep.subr.mxu0 0.0
        %416 = vmatpush1.xpose.msra.mxu0 0.0
        %417 = vmatprep.subr.mxu0 0.0
        %418 = vmatpush1.xpose.msra.mxu0 0.0
        %419 = vmatprep.subr.mxu0 0.0
        %420 = vmatpush1.xpose.msra.mxu0 0.0
        %421 = vmatprep.subr.mxu0 0.0
        %422 = vmatpush1.xpose.msra.mxu0 0.0
        %423 = vmatprep.subr.mxu0 0.0
        %424 = vmatpush1.xpose.msra.mxu0 0.0
        %425 = vmatprep.subr.mxu0 0.0
        %426 = vmatpush1.xpose.msra.mxu0 0.0
        %427 = vmatprep.subr.mxu0 0.0
        %428 = vmatpush1.xpose.msra.mxu0 0.0
        %429 = vmatprep.subr.mxu0 0.0
        %430 = vmatpush1.xpose.msra.mxu0 0.0
        %431 = vmatprep.mubr.f32.mxu0 0.0
        %432 = vmatmul.mubr.f32.gmra.mrb[0].mxu0 %v344
        %v433 = vpop.f32.mrb[0].mxu0
        %v434 = vadd.f32 0.0, %v433
        %v435 = vpop.f32.mrb[0].mxu0
        %436 = vmatprep.mubr.f32.mxu0 0.0
        %437 = vmatmul.mubr.f32.gmra.mrb[0].mxu0 %v347
        %v438 = vpop.f32.mrb[0].mxu0
        %v439 = vadd.f32 0.0, %v438
        %v440 = vpop.f32.mrb[0].mxu0
        %441 = vmatprep.mubr.f32.mxu0 0.0
        %442 = vmatmul.mubr.f32.gmra.mrb[0].mxu0 %v350
        %v443 = vpop.f32.mrb[0].mxu0
        %v444 = vadd.f32 0.0, %v443
        %v445 = vpop.f32.mrb[0].mxu0
        %446 = vmatprep.mubr.f32.mxu0 0.0
        %447 = vmatmul.mubr.f32.gmra.mrb[0].mxu0 %v353
        %v448 = vpop.f32.mrb[0].mxu0
        %v449 = vadd.f32 0.0, %v448
        %v450 = vpop.f32.mrb[0].mxu0
        %451 = vmatprep.mubr.f32.mxu0 0.0
        %452 = vmatmul.mubr.f32.gmra.mrb[0].mxu0 %v356
        %v453 = vpop.f32.mrb[0].mxu0
        %v454 = vadd.f32 0.0, %v453
        %v455 = vpop.f32.mrb[0].mxu0
        %456 = vmatprep.mubr.f32.mxu0 0.0
        %457 = vmatmul.mubr.f32.gmra.mrb[0].mxu0 %v359
        %v458 = vpop.f32.mrb[0].mxu0
        %v459 = vadd.f32 0.0, %v458
        %v460 = vpop.f32.mrb[0].mxu0
        %461 = vmatprep.mubr.f32.mxu0 0.0
        %462 = vmatmul.mubr.f32.gmra.mrb[0].mxu0 %v362
        %v463 = vpop.f32.mrb[0].mxu0
        %v464 = vadd.f32 0.0, %v463
        %v465 = vpop.f32.mrb[0].mxu0
        %466 = vmatprep.mubr.f32.mxu0 0.0
        %467 = vmatmul.mubr.f32.gmra.mrb[0].mxu0 %v365
        %v468 = vpop.f32.mrb[0].mxu0
        %v469 = vadd.f32 0.0, %v468
        %v470 = vpop.f32.mrb[0].mxu0
        %471 = vdwg.mxu0
        %v473 = vsel %vm342, %v286, 0
        %v476 = vsel %vm342, %v287, 0
        %v479 = vsel %vm342, %v288, 0
        %v482 = vsel %vm342, %v289, 0
        %v485 = vsel %vm342, %v290, 0
        %v488 = vsel %vm342, %v291, 0
        %v491 = vsel %vm342, %v292, 0
        %v494 = vsel %vm342, %v293, 0
        %496 = vmatprep.subr.mxu0 0.0
        %497 = vmatpush1.xpose.msra.mxu0 %v473
        %498 = vmatprep.subr.mxu0 0.0
        %499 = vmatpush1.xpose.msra.mxu0 %v476
        %500 = vmatprep.subr.mxu0 0.0
        %501 = vmatpush1.xpose.msra.mxu0 %v479
        %502 = vmatprep.subr.mxu0 0.0
        %503 = vmatpush1.xpose.msra.mxu0 %v482
        %504 = vmatprep.subr.mxu0 0.0
        %505 = vmatpush1.xpose.msra.mxu0 %v485
        %506 = vmatprep.subr.mxu0 0.0
        %507 = vmatpush1.xpose.msra.mxu0 %v488
        %508 = vmatprep.subr.mxu0 0.0
        %509 = vmatpush1.xpose.msra.mxu0 %v491
        %510 = vmatprep.subr.mxu0 0.0
        %511 = vmatpush1.xpose.msra.mxu0 %v494
        %512 = vmatprep.subr.mxu0 0.0
        %513 = vmatpush1.xpose.msra.mxu0 0.0
        %514 = vmatprep.subr.mxu0 0.0
        %515 = vmatpush1.xpose.msra.mxu0 0.0
        %516 = vmatprep.subr.mxu0 0.0
        %517 = vmatpush1.xpose.msra.mxu0 0.0
        %518 = vmatprep.subr.mxu0 0.0
        %519 = vmatpush1.xpose.msra.mxu0 0.0
        %520 = vmatprep.subr.mxu0 0.0
        %521 = vmatpush1.xpose.msra.mxu0 0.0
        %522 = vmatprep.subr.mxu0 0.0
        %523 = vmatpush1.xpose.msra.mxu0 0.0
        %524 = vmatprep.subr.mxu0 0.0
        %525 = vmatpush1.xpose.msra.mxu0 0.0
        %526 = vmatprep.subr.mxu0 0.0
        %527 = vmatpush1.xpose.msra.mxu0 0.0
        %528 = vmatprep.subr.mxu0 0.0
        %529 = vmatpush1.xpose.msra.mxu0 0.0
        %530 = vmatprep.subr.mxu0 0.0
        %531 = vmatpush1.xpose.msra.mxu0 0.0
        %532 = vmatprep.subr.mxu0 0.0
        %533 = vmatpush1.xpose.msra.mxu0 0.0
        %534 = vmatprep.subr.mxu0 0.0
        %535 = vmatpush1.xpose.msra.mxu0 0.0
        %536 = vmatprep.subr.mxu0 0.0
        %537 = vmatpush1.xpose.msra.mxu0 0.0
        %538 = vmatprep.subr.mxu0 0.0
        %539 = vmatpush1.xpose.msra.mxu0 0.0
        %540 = vmatprep.subr.mxu0 0.0
        %541 = vmatpush1.xpose.msra.mxu0 0.0
        %542 = vmatprep.subr.mxu0 0.0
        %543 = vmatpush1.xpose.msra.mxu0 0.0
        %544 = vmatprep.subr.mxu0 0.0
        %545 = vmatpush1.xpose.msra.mxu0 0.0
        %546 = vmatprep.subr.mxu0 0.0
        %547 = vmatpush1.xpose.msra.mxu0 0.0
        %548 = vmatprep.subr.mxu0 0.0
        %549 = vmatpush1.xpose.msra.mxu0 0.0
        %550 = vmatprep.subr.mxu0 0.0
        %551 = vmatpush1.xpose.msra.mxu0 0.0
        %552 = vmatprep.subr.mxu0 0.0
        %553 = vmatpush1.xpose.msra.mxu0 0.0
        %554 = vmatprep.subr.mxu0 0.0
        %555 = vmatpush1.xpose.msra.mxu0 0.0
        %556 = vmatprep.subr.mxu0 0.0
        %557 = vmatpush1.xpose.msra.mxu0 0.0
        %558 = vmatprep.subr.mxu0 0.0
        %559 = vmatpush1.xpose.msra.mxu0 0.0
        %560 = vmatprep.mubr.f32.mxu0 0.0
        %561 = vmatmul.mubr.f32.gmra.mrb[0].mxu0 %v473
        %v562 = vpop.f32.mrb[0].mxu0
        %v563 = vadd.f32 0.0, %v562
        %v564 = vpop.f32.mrb[0].mxu0
        %565 = vmatprep.mubr.f32.mxu0 0.0
        %566 = vmatmul.mubr.f32.gmra.mrb[0].mxu0 %v476
        %v567 = vpop.f32.mrb[0].mxu0
        %v568 = vadd.f32 0.0, %v567
        %v569 = vpop.f32.mrb[0].mxu0
        %570 = vmatprep.mubr.f32.mxu0 0.0
        %571 = vmatmul.mubr.f32.gmra.mrb[0].mxu0 %v479
        %v572 = vpop.f32.mrb[0].mxu0
        %v573 = vadd.f32 0.0, %v572
        %v574 = vpop.f32.mrb[0].mxu0
        %575 = vmatprep.mubr.f32.mxu0 0.0
        %576 = vmatmul.mubr.f32.gmra.mrb[0].mxu0 %v482
        %v577 = vpop.f32.mrb[0].mxu0
        %v578 = vadd.f32 0.0, %v577
        %v579 = vpop.f32.mrb[0].mxu0
        %580 = vmatprep.mubr.f32.mxu0 0.0
        %581 = vmatmul.mubr.f32.gmra.mrb[0].mxu0 %v485
        %v582 = vpop.f32.mrb[0].mxu0
        %v583 = vadd.f32 0.0, %v582
        %v584 = vpop.f32.mrb[0].mxu0
        %585 = vmatprep.mubr.f32.mxu0 0.0
        %586 = vmatmul.mubr.f32.gmra.mrb[0].mxu0 %v488
        %v587 = vpop.f32.mrb[0].mxu0
        %v588 = vadd.f32 0.0, %v587
        %v589 = vpop.f32.mrb[0].mxu0
        %590 = vmatprep.mubr.f32.mxu0 0.0
        %591 = vmatmul.mubr.f32.gmra.mrb[0].mxu0 %v491
        %v592 = vpop.f32.mrb[0].mxu0
        %v593 = vadd.f32 0.0, %v592
        %v594 = vpop.f32.mrb[0].mxu0
        %595 = vmatprep.mubr.f32.mxu0 0.0
        %596 = vmatmul.mubr.f32.gmra.mrb[0].mxu0 %v494
        %v597 = vpop.f32.mrb[0].mxu0
        %v598 = vadd.f32 0.0, %v597
        %v599 = vpop.f32.mrb[0].mxu0
        %600 = vdwg.mxu0
        %v602 = vsel %vm342, %v294, 0
        %v605 = vsel %vm342, %v295, 0
        %v608 = vsel %vm342, %v296, 0
        %v611 = vsel %vm342, %v297, 0
        %v614 = vsel %vm342, %v298, 0
        %v617 = vsel %vm342, %v299, 0
        %v620 = vsel %vm342, %v300, 0
        %v623 = vsel %vm342, %v301, 0
        %625 = vmatprep.subr.mxu0 0.0
        %626 = vmatpush1.xpose.msra.mxu0 %v602
        %627 = vmatprep.subr.mxu0 0.0
        %628 = vmatpush1.xpose.msra.mxu0 %v605
        %629 = vmatprep.subr.mxu0 0.0
        %630 = vmatpush1.xpose.msra.mxu0 %v608
        %631 = vmatprep.subr.mxu0 0.0
        %632 = vmatpush1.xpose.msra.mxu0 %v611
        %633 = vmatprep.subr.mxu0 0.0
        %634 = vmatpush1.xpose.msra.mxu0 %v614
        %635 = vmatprep.subr.mxu0 0.0
        %636 = vmatpush1.xpose.msra.mxu0 %v617
        %637 = vmatprep.subr.mxu0 0.0
        %638 = vmatpush1.xpose.msra.mxu0 %v620
        %639 = vmatprep.subr.mxu0 0.0
        %640 = vmatpush1.xpose.msra.mxu0 %v623
        %641 = vmatprep.subr.mxu0 0.0
        %642 = vmatpush1.xpose.msra.mxu0 0.0
        %643 = vmatprep.subr.mxu0 0.0
        %644 = vmatpush1.xpose.msra.mxu0 0.0
        %645 = vmatprep.subr.mxu0 0.0
        %646 = vmatpush1.xpose.msra.mxu0 0.0
        %647 = vmatprep.subr.mxu0 0.0
        %648 = vmatpush1.xpose.msra.mxu0 0.0
        %649 = vmatprep.subr.mxu0 0.0
        %650 = vmatpush1.xpose.msra.mxu0 0.0
        %651 = vmatprep.subr.mxu0 0.0
        %652 = vmatpush1.xpose.msra.mxu0 0.0
        %653 = vmatprep.subr.mxu0 0.0
        %654 = vmatpush1.xpose.msra.mxu0 0.0
        %655 = vmatprep.subr.mxu0 0.0
        %656 = vmatpush1.xpose.msra.mxu0 0.0
        %657 = vmatprep.subr.mxu0 0.0
        %658 = vmatpush1.xpose.msra.mxu0 0.0
        %659 = vmatprep.subr.mxu0 0.0
        %660 = vmatpush1.xpose.msra.mxu0 0.0
        %661 = vmatprep.subr.mxu0 0.0
        %662 = vmatpush1.xpose.msra.mxu0 0.0
        %663 = vmatprep.subr.mxu0 0.0
        %664 = vmatpush1.xpose.msra.mxu0 0.0
        %665 = vmatprep.subr.mxu0 0.0
        %666 = vmatpush1.xpose.msra.mxu0 0.0
        %667 = vmatprep.subr.mxu0 0.0
        %668 = vmatpush1.xpose.msra.mxu0 0.0
        %669 = vmatprep.subr.mxu0 0.0
        %670 = vmatpush1.xpose.msra.mxu0 0.0
        %671 = vmatprep.subr.mxu0 0.0
        %672 = vmatpush1.xpose.msra.mxu0 0.0
        %673 = vmatprep.subr.mxu0 0.0
        %674 = vmatpush1.xpose.msra.mxu0 0.0
        %675 = vmatprep.subr.mxu0 0.0
        %676 = vmatpush1.xpose.msra.mxu0 0.0
        %677 = vmatprep.subr.mxu0 0.0
        %678 = vmatpush1.xpose.msra.mxu0 0.0
        %679 = vmatprep.subr.mxu0 0.0
        %680 = vmatpush1.xpose.msra.mxu0 0.0
        %681 = vmatprep.subr.mxu0 0.0
        %682 = vmatpush1.xpose.msra.mxu0 0.0
        %683 = vmatprep.subr.mxu0 0.0
        %684 = vmatpush1.xpose.msra.mxu0 0.0
        %685 = vmatprep.subr.mxu0 0.0
        %686 = vmatpush1.xpose.msra.mxu0 0.0
        %687 = vmatprep.subr.mxu0 0.0
        %688 = vmatpush1.xpose.msra.mxu0 0.0
        %689 = vmatprep.mubr.f32.mxu0 0.0
        %690 = vmatmul.mubr.f32.gmra.mrb[0].mxu0 %v602
        %v691 = vpop.f32.mrb[0].mxu0
        %v692 = vadd.f32 0.0, %v691
        %v693 = vpop.f32.mrb[0].mxu0
        %694 = vmatprep.mubr.f32.mxu0 0.0
        %695 = vmatmul.mubr.f32.gmra.mrb[0].mxu0 %v605
        %v696 = vpop.f32.mrb[0].mxu0
        %v697 = vadd.f32 0.0, %v696
        %v698 = vpop.f32.mrb[0].mxu0
        %699 = vmatprep.mubr.f32.mxu0 0.0
        %700 = vmatmul.mubr.f32.gmra.mrb[0].mxu0 %v608
        %v701 = vpop.f32.mrb[0].mxu0
        %v702 = vadd.f32 0.0, %v701
        %v703 = vpop.f32.mrb[0].mxu0
        %704 = vmatprep.mubr.f32.mxu0 0.0
        %705 = vmatmul.mubr.f32.gmra.mrb[0].mxu0 %v611
        %v706 = vpop.f32.mrb[0].mxu0
        %v707 = vadd.f32 0.0, %v706
        %v708 = vpop.f32.mrb[0].mxu0
        %709 = vmatprep.mubr.f32.mxu0 0.0
        %710 = vmatmul.mubr.f32.gmra.mrb[0].mxu0 %v614
        %v711 = vpop.f32.mrb[0].mxu0
        %v712 = vadd.f32 0.0, %v711
        %v713 = vpop.f32.mrb[0].mxu0
        %714 = vmatprep.mubr.f32.mxu0 0.0
        %715 = vmatmul.mubr.f32.gmra.mrb[0].mxu0 %v617
        %v716 = vpop.f32.mrb[0].mxu0
        %v717 = vadd.f32 0.0, %v716
        %v718 = vpop.f32.mrb[0].mxu0
        %719 = vmatprep.mubr.f32.mxu0 0.0
        %720 = vmatmul.mubr.f32.gmra.mrb[0].mxu0 %v620
        %v721 = vpop.f32.mrb[0].mxu0
        %v722 = vadd.f32 0.0, %v721
        %v723 = vpop.f32.mrb[0].mxu0
        %724 = vmatprep.mubr.f32.mxu0 0.0
        %725 = vmatmul.mubr.f32.gmra.mrb[0].mxu0 %v623
        %v726 = vpop.f32.mrb[0].mxu0
        %v727 = vadd.f32 0.0, %v726
        %v728 = vpop.f32.mrb[0].mxu0
        %729 = vdwg.mxu0
        %v731 = vsel %vm342, %v302, 0
        %v734 = vsel %vm342, %v303, 0
        %v737 = vsel %vm342, %v304, 0
        %v740 = vsel %vm342, %v305, 0
        %v743 = vsel %vm342, %v306, 0
        %v746 = vsel %vm342, %v307, 0
        %v749 = vsel %vm342, %v308, 0
        %v752 = vsel %vm342, %v309, 0
        %754 = vmatprep.subr.mxu0 0.0
        %755 = vmatpush1.xpose.msra.mxu0 %v731
        %756 = vmatprep.subr.mxu0 0.0
        %757 = vmatpush1.xpose.msra.mxu0 %v734
        %758 = vmatprep.subr.mxu0 0.0
        %759 = vmatpush1.xpose.msra.mxu0 %v737
        %760 = vmatprep.subr.mxu0 0.0
        %761 = vmatpush1.xpose.msra.mxu0 %v740
        %762 = vmatprep.subr.mxu0 0.0
        %763 = vmatpush1.xpose.msra.mxu0 %v743
        %764 = vmatprep.subr.mxu0 0.0
        %765 = vmatpush1.xpose.msra.mxu0 %v746
        %766 = vmatprep.subr.mxu0 0.0
        %767 = vmatpush1.xpose.msra.mxu0 %v749
        %768 = vmatprep.subr.mxu0 0.0
        %769 = vmatpush1.xpose.msra.mxu0 %v752
        %770 = vmatprep.subr.mxu0 0.0
        %771 = vmatpush1.xpose.msra.mxu0 0.0
        %772 = vmatprep.subr.mxu0 0.0
        %773 = vmatpush1.xpose.msra.mxu0 0.0
        %774 = vmatprep.subr.mxu0 0.0
        %775 = vmatpush1.xpose.msra.mxu0 0.0
        %776 = vmatprep.subr.mxu0 0.0
        %777 = vmatpush1.xpose.msra.mxu0 0.0
        %778 = vmatprep.subr.mxu0 0.0
        %779 = vmatpush1.xpose.msra.mxu0 0.0
        %780 = vmatprep.subr.mxu0 0.0
        %781 = vmatpush1.xpose.msra.mxu0 0.0
        %782 = vmatprep.subr.mxu0 0.0
        %783 = vmatpush1.xpose.msra.mxu0 0.0
        %784 = vmatprep.subr.mxu0 0.0
        %785 = vmatpush1.xpose.msra.mxu0 0.0
        %786 = vmatprep.subr.mxu0 0.0
        %787 = vmatpush1.xpose.msra.mxu0 0.0
        %788 = vmatprep.subr.mxu0 0.0
        %789 = vmatpush1.xpose.msra.mxu0 0.0
        %790 = vmatprep.subr.mxu0 0.0
        %791 = vmatpush1.xpose.msra.mxu0 0.0
        %792 = vmatprep.subr.mxu0 0.0
        %793 = vmatpush1.xpose.msra.mxu0 0.0
        %794 = vmatprep.subr.mxu0 0.0
        %795 = vmatpush1.xpose.msra.mxu0 0.0
        %796 = vmatprep.subr.mxu0 0.0
        %797 = vmatpush1.xpose.msra.mxu0 0.0
        %798 = vmatprep.subr.mxu0 0.0
        %799 = vmatpush1.xpose.msra.mxu0 0.0
        %800 = vmatprep.subr.mxu0 0.0
        %801 = vmatpush1.xpose.msra.mxu0 0.0
        %802 = vmatprep.subr.mxu0 0.0
        %803 = vmatpush1.xpose.msra.mxu0 0.0
        %804 = vmatprep.subr.mxu0 0.0
        %805 = vmatpush1.xpose.msra.mxu0 0.0
        %806 = vmatprep.subr.mxu0 0.0
        %807 = vmatpush1.xpose.msra.mxu0 0.0
        %808 = vmatprep.subr.mxu0 0.0
        %809 = vmatpush1.xpose.msra.mxu0 0.0
        %810 = vmatprep.subr.mxu0 0.0
        %811 = vmatpush1.xpose.msra.mxu0 0.0
        %812 = vmatprep.subr.mxu0 0.0
        %813 = vmatpush1.xpose.msra.mxu0 0.0
        %814 = vmatprep.subr.mxu0 0.0
        %815 = vmatpush1.xpose.msra.mxu0 0.0
        %816 = vmatprep.subr.mxu0 0.0
        %817 = vmatpush1.xpose.msra.mxu0 0.0
        %818 = vmatprep.mubr.f32.mxu0 0.0
        %819 = vmatmul.mubr.f32.gmra.mrb[0].mxu0 %v731
        %v820 = vpop.f32.mrb[0].mxu0
        %v821 = vadd.f32 0.0, %v820
        %v822 = vpop.f32.mrb[0].mxu0
        %823 = vmatprep.mubr.f32.mxu0 0.0
        %824 = vmatmul.mubr.f32.gmra.mrb[0].mxu0 %v734
        %v825 = vpop.f32.mrb[0].mxu0
        %v826 = vadd.f32 0.0, %v825
        %v827 = vpop.f32.mrb[0].mxu0
        %828 = vmatprep.mubr.f32.mxu0 0.0
        %829 = vmatmul.mubr.f32.gmra.mrb[0].mxu0 %v737
        %v830 = vpop.f32.mrb[0].mxu0
        %v831 = vadd.f32 0.0, %v830
        %v832 = vpop.f32.mrb[0].mxu0
        %833 = vmatprep.mubr.f32.mxu0 0.0
        %834 = vmatmul.mubr.f32.gmra.mrb[0].mxu0 %v740
        %v835 = vpop.f32.mrb[0].mxu0
        %v836 = vadd.f32 0.0, %v835
        %v837 = vpop.f32.mrb[0].mxu0
        %838 = vmatprep.mubr.f32.mxu0 0.0
        %839 = vmatmul.mubr.f32.gmra.mrb[0].mxu0 %v743
        %v840 = vpop.f32.mrb[0].mxu0
        %v841 = vadd.f32 0.0, %v840
        %v842 = vpop.f32.mrb[0].mxu0
        %843 = vmatprep.mubr.f32.mxu0 0.0
        %844 = vmatmul.mubr.f32.gmra.mrb[0].mxu0 %v746
        %v845 = vpop.f32.mrb[0].mxu0
        %v846 = vadd.f32 0.0, %v845
        %v847 = vpop.f32.mrb[0].mxu0
        %848 = vmatprep.mubr.f32.mxu0 0.0
        %849 = vmatmul.mubr.f32.gmra.mrb[0].mxu0 %v749
        %v850 = vpop.f32.mrb[0].mxu0
        %v851 = vadd.f32 0.0, %v850
        %v852 = vpop.f32.mrb[0].mxu0
        %853 = vmatprep.mubr.f32.mxu0 0.0
        %854 = vmatmul.mubr.f32.gmra.mrb[0].mxu0 %v752
        %v855 = vpop.f32.mrb[0].mxu0
        %v856 = vadd.f32 0.0, %v855
        %v857 = vpop.f32.mrb[0].mxu0
        %858 = vdwg.mxu0
        %v860 = vsel %vm342, %v310, 0
        %v863 = vsel %vm342, %v311, 0
        %v866 = vsel %vm342, %v312, 0
        %v869 = vsel %vm342, %v313, 0
        %v872 = vsel %vm342, %v314, 0
        %v875 = vsel %vm342, %v315, 0
        %v878 = vsel %vm342, %v316, 0
        %v881 = vsel %vm342, %v317, 0
        %883 = vmatprep.subr.mxu0 0.0
        %884 = vmatpush1.xpose.msra.mxu0 %v860
        %885 = vmatprep.subr.mxu0 0.0
        %886 = vmatpush1.xpose.msra.mxu0 %v863
        %887 = vmatprep.subr.mxu0 0.0
        %888 = vmatpush1.xpose.msra.mxu0 %v866
        %889 = vmatprep.subr.mxu0 0.0
        %890 = vmatpush1.xpose.msra.mxu0 %v869
        %891 = vmatprep.subr.mxu0 0.0
        %892 = vmatpush1.xpose.msra.mxu0 %v872
        %893 = vmatprep.subr.mxu0 0.0
        %894 = vmatpush1.xpose.msra.mxu0 %v875
        %895 = vmatprep.subr.mxu0 0.0
        %896 = vmatpush1.xpose.msra.mxu0 %v878
        %897 = vmatprep.subr.mxu0 0.0
        %898 = vmatpush1.xpose.msra.mxu0 %v881
        %899 = vmatprep.subr.mxu0 0.0
        %900 = vmatpush1.xpose.msra.mxu0 0.0
        %901 = vmatprep.subr.mxu0 0.0
        %902 = vmatpush1.xpose.msra.mxu0 0.0
        %903 = vmatprep.subr.mxu0 0.0
        %904 = vmatpush1.xpose.msra.mxu0 0.0
        %905 = vmatprep.subr.mxu0 0.0
        %906 = vmatpush1.xpose.msra.mxu0 0.0
        %907 = vmatprep.subr.mxu0 0.0
        %908 = vmatpush1.xpose.msra.mxu0 0.0
        %909 = vmatprep.subr.mxu0 0.0
        %910 = vmatpush1.xpose.msra.mxu0 0.0
        %911 = vmatprep.subr.mxu0 0.0
        %912 = vmatpush1.xpose.msra.mxu0 0.0
        %913 = vmatprep.subr.mxu0 0.0
        %914 = vmatpush1.xpose.msra.mxu0 0.0
        %915 = vmatprep.subr.mxu0 0.0
        %916 = vmatpush1.xpose.msra.mxu0 0.0
        %917 = vmatprep.subr.mxu0 0.0
        %918 = vmatpush1.xpose.msra.mxu0 0.0
        %919 = vmatprep.subr.mxu0 0.0
        %920 = vmatpush1.xpose.msra.mxu0 0.0
        %921 = vmatprep.subr.mxu0 0.0
        %922 = vmatpush1.xpose.msra.mxu0 0.0
        %923 = vmatprep.subr.mxu0 0.0
        %924 = vmatpush1.xpose.msra.mxu0 0.0
        %925 = vmatprep.subr.mxu0 0.0
        %926 = vmatpush1.xpose.msra.mxu0 0.0
        %927 = vmatprep.subr.mxu0 0.0
        %928 = vmatpush1.xpose.msra.mxu0 0.0
        %929 = vmatprep.subr.mxu0 0.0
        %930 = vmatpush1.xpose.msra.mxu0 0.0
        %931 = vmatprep.subr.mxu0 0.0
        %932 = vmatpush1.xpose.msra.mxu0 0.0
        %933 = vmatprep.subr.mxu0 0.0
        %934 = vmatpush1.xpose.msra.mxu0 0.0
        %935 = vmatprep.subr.mxu0 0.0
        %936 = vmatpush1.xpose.msra.mxu0 0.0
        %937 = vmatprep.subr.mxu0 0.0
        %938 = vmatpush1.xpose.msra.mxu0 0.0
        %939 = vmatprep.subr.mxu0 0.0
        %940 = vmatpush1.xpose.msra.mxu0 0.0
        %941 = vmatprep.subr.mxu0 0.0
        %942 = vmatpush1.xpose.msra.mxu0 0.0
        %943 = vmatprep.subr.mxu0 0.0
        %944 = vmatpush1.xpose.msra.mxu0 0.0
        %945 = vmatprep.subr.mxu0 0.0
        %946 = vmatpush1.xpose.msra.mxu0 0.0
        %947 = vmatprep.mubr.f32.mxu0 0.0
        %948 = vmatmul.mubr.f32.gmra.mrb[0].mxu0 %v860
        %v949 = vpop.f32.mrb[0].mxu0
        %v950 = vadd.f32 0.0, %v949
        %v951 = vpop.f32.mrb[0].mxu0
        %952 = vmatprep.mubr.f32.mxu0 0.0
        %953 = vmatmul.mubr.f32.gmra.mrb[0].mxu0 %v863
        %v954 = vpop.f32.mrb[0].mxu0
        %v955 = vadd.f32 0.0, %v954
        %v956 = vpop.f32.mrb[0].mxu0
        %957 = vmatprep.mubr.f32.mxu0 0.0
        %958 = vmatmul.mubr.f32.gmra.mrb[0].mxu0 %v866
        %v959 = vpop.f32.mrb[0].mxu0
        %v960 = vadd.f32 0.0, %v959
        %v961 = vpop.f32.mrb[0].mxu0
        %962 = vmatprep.mubr.f32.mxu0 0.0
        %963 = vmatmul.mubr.f32.gmra.mrb[0].mxu0 %v869
        %v964 = vpop.f32.mrb[0].mxu0
        %v965 = vadd.f32 0.0, %v964
        %v966 = vpop.f32.mrb[0].mxu0
        %967 = vmatprep.mubr.f32.mxu0 0.0
        %968 = vmatmul.mubr.f32.gmra.mrb[0].mxu0 %v872
        %v969 = vpop.f32.mrb[0].mxu0
        %v970 = vadd.f32 0.0, %v969
        %v971 = vpop.f32.mrb[0].mxu0
        %972 = vmatprep.mubr.f32.mxu0 0.0
        %973 = vmatmul.mubr.f32.gmra.mrb[0].mxu0 %v875
        %v974 = vpop.f32.mrb[0].mxu0
        %v975 = vadd.f32 0.0, %v974
        %v976 = vpop.f32.mrb[0].mxu0
        %977 = vmatprep.mubr.f32.mxu0 0.0
        %978 = vmatmul.mubr.f32.gmra.mrb[0].mxu0 %v878
        %v979 = vpop.f32.mrb[0].mxu0
        %v980 = vadd.f32 0.0, %v979
        %v981 = vpop.f32.mrb[0].mxu0
        %982 = vmatprep.mubr.f32.mxu0 0.0
        %983 = vmatmul.mubr.f32.gmra.mrb[0].mxu0 %v881
        %v984 = vpop.f32.mrb[0].mxu0
        %v985 = vadd.f32 0.0, %v984
        %v986 = vpop.f32.mrb[0].mxu0
        %987 = vdwg.mxu0
        %v989 = vsel %vm342, %v318, 0
        %v992 = vsel %vm342, %v319, 0
        %v995 = vsel %vm342, %v320, 0
        %v998 = vsel %vm342, %v321, 0
        %v1001 = vsel %vm342, %v322, 0
        %v1004 = vsel %vm342, %v323, 0
        %v1007 = vsel %vm342, %v324, 0
        %v1010 = vsel %vm342, %v325, 0
        %1012 = vmatprep.subr.mxu0 0.0
        %1013 = vmatpush1.xpose.msra.mxu0 %v989
        %1014 = vmatprep.subr.mxu0 0.0
        %1015 = vmatpush1.xpose.msra.mxu0 %v992
        %1016 = vmatprep.subr.mxu0 0.0
        %1017 = vmatpush1.xpose.msra.mxu0 %v995
        %1018 = vmatprep.subr.mxu0 0.0
        %1019 = vmatpush1.xpose.msra.mxu0 %v998
        %1020 = vmatprep.subr.mxu0 0.0
        %1021 = vmatpush1.xpose.msra.mxu0 %v1001
        %1022 = vmatprep.subr.mxu0 0.0
        %1023 = vmatpush1.xpose.msra.mxu0 %v1004
        %1024 = vmatprep.subr.mxu0 0.0
        %1025 = vmatpush1.xpose.msra.mxu0 %v1007
        %1026 = vmatprep.subr.mxu0 0.0
        %1027 = vmatpush1.xpose.msra.mxu0 %v1010
        %1028 = vmatprep.subr.mxu0 0.0
        %1029 = vmatpush1.xpose.msra.mxu0 0.0
        %1030 = vmatprep.subr.mxu0 0.0
        %1031 = vmatpush1.xpose.msra.mxu0 0.0
        %1032 = vmatprep.subr.mxu0 0.0
        %1033 = vmatpush1.xpose.msra.mxu0 0.0
        %1034 = vmatprep.subr.mxu0 0.0
        %1035 = vmatpush1.xpose.msra.mxu0 0.0
        %1036 = vmatprep.subr.mxu0 0.0
        %1037 = vmatpush1.xpose.msra.mxu0 0.0
        %1038 = vmatprep.subr.mxu0 0.0
        %1039 = vmatpush1.xpose.msra.mxu0 0.0
        %1040 = vmatprep.subr.mxu0 0.0
        %1041 = vmatpush1.xpose.msra.mxu0 0.0
        %1042 = vmatprep.subr.mxu0 0.0
        %1043 = vmatpush1.xpose.msra.mxu0 0.0
        %1044 = vmatprep.subr.mxu0 0.0
        %1045 = vmatpush1.xpose.msra.mxu0 0.0
        %1046 = vmatprep.subr.mxu0 0.0
        %1047 = vmatpush1.xpose.msra.mxu0 0.0
        %1048 = vmatprep.subr.mxu0 0.0
        %1049 = vmatpush1.xpose.msra.mxu0 0.0
        %1050 = vmatprep.subr.mxu0 0.0
        %1051 = vmatpush1.xpose.msra.mxu0 0.0
        %1052 = vmatprep.subr.mxu0 0.0
        %1053 = vmatpush1.xpose.msra.mxu0 0.0
        %1054 = vmatprep.subr.mxu0 0.0
        %1055 = vmatpush1.xpose.msra.mxu0 0.0
        %1056 = vmatprep.subr.mxu0 0.0
        %1057 = vmatpush1.xpose.msra.mxu0 0.0
        %1058 = vmatprep.subr.mxu0 0.0
        %1059 = vmatpush1.xpose.msra.mxu0 0.0
        %1060 = vmatprep.subr.mxu0 0.0
        %1061 = vmatpush1.xpose.msra.mxu0 0.0
        %1062 = vmatprep.subr.mxu0 0.0
        %1063 = vmatpush1.xpose.msra.mxu0 0.0
        %1064 = vmatprep.subr.mxu0 0.0
        %1065 = vmatpush1.xpose.msra.mxu0 0.0
        %1066 = vmatprep.subr.mxu0 0.0
        %1067 = vmatpush1.xpose.msra.mxu0 0.0
        %1068 = vmatprep.subr.mxu0 0.0
        %1069 = vmatpush1.xpose.msra.mxu0 0.0
        %1070 = vmatprep.subr.mxu0 0.0
        %1071 = vmatpush1.xpose.msra.mxu0 0.0
        %1072 = vmatprep.subr.mxu0 0.0
        %1073 = vmatpush1.xpose.msra.mxu0 0.0
        %1074 = vmatprep.subr.mxu0 0.0
        %1075 = vmatpush1.xpose.msra.mxu0 0.0
        %1076 = vmatprep.mubr.f32.mxu0 0.0
        %1077 = vmatmul.mubr.f32.gmra.mrb[0].mxu0 %v989
        %v1078 = vpop.f32.mrb[0].mxu0
        %v1079 = vadd.f32 0.0, %v1078
        %v1080 = vpop.f32.mrb[0].mxu0
        %1081 = vmatprep.mubr.f32.mxu0 0.0
        %1082 = vmatmul.mubr.f32.gmra.mrb[0].mxu0 %v992
        %v1083 = vpop.f32.mrb[0].mxu0
        %v1084 = vadd.f32 0.0, %v1083
        %v1085 = vpop.f32.mrb[0].mxu0
        %1086 = vmatprep.mubr.f32.mxu0 0.0
        %1087 = vmatmul.mubr.f32.gmra.mrb[0].mxu0 %v995
        %v1088 = vpop.f32.mrb[0].mxu0
        %v1089 = vadd.f32 0.0, %v1088
        %v1090 = vpop.f32.mrb[0].mxu0
        %1091 = vmatprep.mubr.f32.mxu0 0.0
        %1092 = vmatmul.mubr.f32.gmra.mrb[0].mxu0 %v998
        %v1093 = vpop.f32.mrb[0].mxu0
        %v1094 = vadd.f32 0.0, %v1093
        %v1095 = vpop.f32.mrb[0].mxu0
        %1096 = vmatprep.mubr.f32.mxu0 0.0
        %1097 = vmatmul.mubr.f32.gmra.mrb[0].mxu0 %v1001
        %v1098 = vpop.f32.mrb[0].mxu0
        %v1099 = vadd.f32 0.0, %v1098
        %v1100 = vpop.f32.mrb[0].mxu0
        %1101 = vmatprep.mubr.f32.mxu0 0.0
        %1102 = vmatmul.mubr.f32.gmra.mrb[0].mxu0 %v1004
        %v1103 = vpop.f32.mrb[0].mxu0
        %v1104 = vadd.f32 0.0, %v1103
        %v1105 = vpop.f32.mrb[0].mxu0
        %1106 = vmatprep.mubr.f32.mxu0 0.0
        %1107 = vmatmul.mubr.f32.gmra.mrb[0].mxu0 %v1007
        %v1108 = vpop.f32.mrb[0].mxu0
        %v1109 = vadd.f32 0.0, %v1108
        %v1110 = vpop.f32.mrb[0].mxu0
        %1111 = vmatprep.mubr.f32.mxu0 0.0
        %1112 = vmatmul.mubr.f32.gmra.mrb[0].mxu0 %v1010
        %v1113 = vpop.f32.mrb[0].mxu0
        %v1114 = vadd.f32 0.0, %v1113
        %v1115 = vpop.f32.mrb[0].mxu0
        %1116 = vdwg.mxu0
        %v1118 = vsel %vm342, %v326, 0
        %v1121 = vsel %vm342, %v327, 0
        %v1124 = vsel %vm342, %v328, 0
        %v1127 = vsel %vm342, %v329, 0
        %v1130 = vsel %vm342, %v330, 0
        %v1133 = vsel %vm342, %v331, 0
        %v1136 = vsel %vm342, %v332, 0
        %v1139 = vsel %vm342, %v333, 0
        %1141 = vmatprep.subr.mxu0 0.0
        %1142 = vmatpush1.xpose.msra.mxu0 %v1118
        %1143 = vmatprep.subr.mxu0 0.0
        %1144 = vmatpush1.xpose.msra.mxu0 %v1121
        %1145 = vmatprep.subr.mxu0 0.0
        %1146 = vmatpush1.xpose.msra.mxu0 %v1124
        %1147 = vmatprep.subr.mxu0 0.0
        %1148 = vmatpush1.xpose.msra.mxu0 %v1127
        %1149 = vmatprep.subr.mxu0 0.0
        %1150 = vmatpush1.xpose.msra.mxu0 %v1130
        %1151 = vmatprep.subr.mxu0 0.0
        %1152 = vmatpush1.xpose.msra.mxu0 %v1133
        %1153 = vmatprep.subr.mxu0 0.0
        %1154 = vmatpush1.xpose.msra.mxu0 %v1136
        %1155 = vmatprep.subr.mxu0 0.0
        %1156 = vmatpush1.xpose.msra.mxu0 %v1139
        %1157 = vmatprep.subr.mxu0 0.0
        %1158 = vmatpush1.xpose.msra.mxu0 0.0
        %1159 = vmatprep.subr.mxu0 0.0
        %1160 = vmatpush1.xpose.msra.mxu0 0.0
        %1161 = vmatprep.subr.mxu0 0.0
        %1162 = vmatpush1.xpose.msra.mxu0 0.0
        %1163 = vmatprep.subr.mxu0 0.0
        %1164 = vmatpush1.xpose.msra.mxu0 0.0
        %1165 = vmatprep.subr.mxu0 0.0
        %1166 = vmatpush1.xpose.msra.mxu0 0.0
        %1167 = vmatprep.subr.mxu0 0.0
        %1168 = vmatpush1.xpose.msra.mxu0 0.0
        %1169 = vmatprep.subr.mxu0 0.0
        %1170 = vmatpush1.xpose.msra.mxu0 0.0
        %1171 = vmatprep.subr.mxu0 0.0
        %1172 = vmatpush1.xpose.msra.mxu0 0.0
        %1173 = vmatprep.subr.mxu0 0.0
        %1174 = vmatpush1.xpose.msra.mxu0 0.0
        %1175 = vmatprep.subr.mxu0 0.0
        %1176 = vmatpush1.xpose.msra.mxu0 0.0
        %1177 = vmatprep.subr.mxu0 0.0
        %1178 = vmatpush1.xpose.msra.mxu0 0.0
        %1179 = vmatprep.subr.mxu0 0.0
        %1180 = vmatpush1.xpose.msra.mxu0 0.0
        %1181 = vmatprep.subr.mxu0 0.0
        %1182 = vmatpush1.xpose.msra.mxu0 0.0
        %1183 = vmatprep.subr.mxu0 0.0
        %1184 = vmatpush1.xpose.msra.mxu0 0.0
        %1185 = vmatprep.subr.mxu0 0.0
        %1186 = vmatpush1.xpose.msra.mxu0 0.0
        %1187 = vmatprep.subr.mxu0 0.0
        %1188 = vmatpush1.xpose.msra.mxu0 0.0
        %1189 = vmatprep.subr.mxu0 0.0
        %1190 = vmatpush1.xpose.msra.mxu0 0.0
        %1191 = vmatprep.subr.mxu0 0.0
        %1192 = vmatpush1.xpose.msra.mxu0 0.0
        %1193 = vmatprep.subr.mxu0 0.0
        %1194 = vmatpush1.xpose.msra.mxu0 0.0
        %1195 = vmatprep.subr.mxu0 0.0
        %1196 = vmatpush1.xpose.msra.mxu0 0.0
        %1197 = vmatprep.subr.mxu0 0.0
        %1198 = vmatpush1.xpose.msra.mxu0 0.0
        %1199 = vmatprep.subr.mxu0 0.0
        %1200 = vmatpush1.xpose.msra.mxu0 0.0
        %1201 = vmatprep.subr.mxu0 0.0
        %1202 = vmatpush1.xpose.msra.mxu0 0.0
        %1203 = vmatprep.subr.mxu0 0.0
        %1204 = vmatpush1.xpose.msra.mxu0 0.0
        %1205 = vmatprep.mubr.f32.mxu0 0.0
        %1206 = vmatmul.mubr.f32.gmra.mrb[0].mxu0 %v1118
        %v1207 = vpop.f32.mrb[0].mxu0
        %v1208 = vadd.f32 0.0, %v1207
        %v1209 = vpop.f32.mrb[0].mxu0
        %1210 = vmatprep.mubr.f32.mxu0 0.0
        %1211 = vmatmul.mubr.f32.gmra.mrb[0].mxu0 %v1121
        %v1212 = vpop.f32.mrb[0].mxu0
        %v1213 = vadd.f32 0.0, %v1212
        %v1214 = vpop.f32.mrb[0].mxu0
        %1215 = vmatprep.mubr.f32.mxu0 0.0
        %1216 = vmatmul.mubr.f32.gmra.mrb[0].mxu0 %v1124
        %v1217 = vpop.f32.mrb[0].mxu0
        %v1218 = vadd.f32 0.0, %v1217
        %v1219 = vpop.f32.mrb[0].mxu0
        %1220 = vmatprep.mubr.f32.mxu0 0.0
        %1221 = vmatmul.mubr.f32.gmra.mrb[0].mxu0 %v1127
        %v1222 = vpop.f32.mrb[0].mxu0
        %v1223 = vadd.f32 0.0, %v1222
        %v1224 = vpop.f32.mrb[0].mxu0
        %1225 = vmatprep.mubr.f32.mxu0 0.0
        %1226 = vmatmul.mubr.f32.gmra.mrb[0].mxu0 %v1130
        %v1227 = vpop.f32.mrb[0].mxu0
        %v1228 = vadd.f32 0.0, %v1227
        %v1229 = vpop.f32.mrb[0].mxu0
        %1230 = vmatprep.mubr.f32.mxu0 0.0
        %1231 = vmatmul.mubr.f32.gmra.mrb[0].mxu0 %v1133
        %v1232 = vpop.f32.mrb[0].mxu0
        %v1233 = vadd.f32 0.0, %v1232
        %v1234 = vpop.f32.mrb[0].mxu0
        %1235 = vmatprep.mubr.f32.mxu0 0.0
        %1236 = vmatmul.mubr.f32.gmra.mrb[0].mxu0 %v1136
        %v1237 = vpop.f32.mrb[0].mxu0
        %v1238 = vadd.f32 0.0, %v1237
        %v1239 = vpop.f32.mrb[0].mxu0
        %1240 = vmatprep.mubr.f32.mxu0 0.0
        %1241 = vmatmul.mubr.f32.gmra.mrb[0].mxu0 %v1139
        %v1242 = vpop.f32.mrb[0].mxu0
        %v1243 = vadd.f32 0.0, %v1242
        %v1244 = vpop.f32.mrb[0].mxu0
        %1245 = vdwg.mxu0
        %v1247 = vsel %vm342, %v334, 0
        %v1250 = vsel %vm342, %v335, 0
        %v1253 = vsel %vm342, %v336, 0
        %v1256 = vsel %vm342, %v337, 0
        %v1259 = vsel %vm342, %v338, 0
        %v1262 = vsel %vm342, %v339, 0
        %v1265 = vsel %vm342, %v340, 0
        %v1268 = vsel %vm342, %v341, 0
        %1270 = vmatprep.subr.mxu0 0.0
        %1271 = vmatpush1.xpose.msra.mxu0 %v1247
        %1272 = vmatprep.subr.mxu0 0.0
        %1273 = vmatpush1.xpose.msra.mxu0 %v1250
        %1274 = vmatprep.subr.mxu0 0.0
        %1275 = vmatpush1.xpose.msra.mxu0 %v1253
        %1276 = vmatprep.subr.mxu0 0.0
        %1277 = vmatpush1.xpose.msra.mxu0 %v1256
        %1278 = vmatprep.subr.mxu0 0.0
        %1279 = vmatpush1.xpose.msra.mxu0 %v1259
        %1280 = vmatprep.subr.mxu0 0.0
        %1281 = vmatpush1.xpose.msra.mxu0 %v1262
        %1282 = vmatprep.subr.mxu0 0.0
        %1283 = vmatpush1.xpose.msra.mxu0 %v1265
        %1284 = vmatprep.subr.mxu0 0.0
        %1285 = vmatpush1.xpose.msra.mxu0 %v1268
        %1286 = vmatprep.subr.mxu0 0.0
        %1287 = vmatpush1.xpose.msra.mxu0 0.0
        %1288 = vmatprep.subr.mxu0 0.0
        %1289 = vmatpush1.xpose.msra.mxu0 0.0
        %1290 = vmatprep.subr.mxu0 0.0
        %1291 = vmatpush1.xpose.msra.mxu0 0.0
        %1292 = vmatprep.subr.mxu0 0.0
        %1293 = vmatpush1.xpose.msra.mxu0 0.0
        %1294 = vmatprep.subr.mxu0 0.0
        %1295 = vmatpush1.xpose.msra.mxu0 0.0
        %1296 = vmatprep.subr.mxu0 0.0
        %1297 = vmatpush1.xpose.msra.mxu0 0.0
        %1298 = vmatprep.subr.mxu0 0.0
        %1299 = vmatpush1.xpose.msra.mxu0 0.0
        %1300 = vmatprep.subr.mxu0 0.0
        %1301 = vmatpush1.xpose.msra.mxu0 0.0
        %1302 = vmatprep.subr.mxu0 0.0
        %1303 = vmatpush1.xpose.msra.mxu0 0.0
        %1304 = vmatprep.subr.mxu0 0.0
        %1305 = vmatpush1.xpose.msra.mxu0 0.0
        %1306 = vmatprep.subr.mxu0 0.0
        %1307 = vmatpush1.xpose.msra.mxu0 0.0
        %1308 = vmatprep.subr.mxu0 0.0
        %1309 = vmatpush1.xpose.msra.mxu0 0.0
        %1310 = vmatprep.subr.mxu0 0.0
        %1311 = vmatpush1.xpose.msra.mxu0 0.0
        %1312 = vmatprep.subr.mxu0 0.0
        %1313 = vmatpush1.xpose.msra.mxu0 0.0
        %1314 = vmatprep.subr.mxu0 0.0
        %1315 = vmatpush1.xpose.msra.mxu0 0.0
        %1316 = vmatprep.subr.mxu0 0.0
        %1317 = vmatpush1.xpose.msra.mxu0 0.0
        %1318 = vmatprep.subr.mxu0 0.0
        %1319 = vmatpush1.xpose.msra.mxu0 0.0
        %1320 = vmatprep.subr.mxu0 0.0
        %1321 = vmatpush1.xpose.msra.mxu0 0.0
        %1322 = vmatprep.subr.mxu0 0.0
        %1323 = vmatpush1.xpose.msra.mxu0 0.0
        %1324 = vmatprep.subr.mxu0 0.0
        %1325 = vmatpush1.xpose.msra.mxu0 0.0
        %1326 = vmatprep.subr.mxu0 0.0
        %1327 = vmatpush1.xpose.msra.mxu0 0.0
        %1328 = vmatprep.subr.mxu0 0.0
        %1329 = vmatpush1.xpose.msra.mxu0 0.0
        %1330 = vmatprep.subr.mxu0 0.0
        %1331 = vmatpush1.xpose.msra.mxu0 0.0
        %1332 = vmatprep.subr.mxu0 0.0
        %1333 = vmatpush1.xpose.msra.mxu0 0.0
        %1334 = vmatprep.mubr.f32.mxu0 0.0
        %1335 = vmatmul.mubr.f32.gmra.mrb[0].mxu0 %v1247
        %v1336 = vpop.f32.mrb[0].mxu0
        %v1337 = vadd.f32 0.0, %v1336
        %v1338 = vpop.f32.mrb[0].mxu0
        %1339 = vmatprep.mubr.f32.mxu0 0.0
        %1340 = vmatmul.mubr.f32.gmra.mrb[0].mxu0 %v1250
        %v1341 = vpop.f32.mrb[0].mxu0
        %v1342 = vadd.f32 0.0, %v1341
        %v1343 = vpop.f32.mrb[0].mxu0
        %1344 = vmatprep.mubr.f32.mxu0 0.0
        %1345 = vmatmul.mubr.f32.gmra.mrb[0].mxu0 %v1253
        %v1346 = vpop.f32.mrb[0].mxu0
        %v1347 = vadd.f32 0.0, %v1346
        %v1348 = vpop.f32.mrb[0].mxu0
        %1349 = vmatprep.mubr.f32.mxu0 0.0
        %1350 = vmatmul.mubr.f32.gmra.mrb[0].mxu0 %v1256
        %v1351 = vpop.f32.mrb[0].mxu0
        %v1352 = vadd.f32 0.0, %v1351
        %v1353 = vpop.f32.mrb[0].mxu0
        %1354 = vmatprep.mubr.f32.mxu0 0.0
        %1355 = vmatmul.mubr.f32.gmra.mrb[0].mxu0 %v1259
        %v1356 = vpop.f32.mrb[0].mxu0
        %v1357 = vadd.f32 0.0, %v1356
        %v1358 = vpop.f32.mrb[0].mxu0
        %1359 = vmatprep.mubr.f32.mxu0 0.0
        %1360 = vmatmul.mubr.f32.gmra.mrb[0].mxu0 %v1262
        %v1361 = vpop.f32.mrb[0].mxu0
        %v1362 = vadd.f32 0.0, %v1361
        %v1363 = vpop.f32.mrb[0].mxu0
        %1364 = vmatprep.mubr.f32.mxu0 0.0
        %1365 = vmatmul.mubr.f32.gmra.mrb[0].mxu0 %v1265
        %v1366 = vpop.f32.mrb[0].mxu0
        %v1367 = vadd.f32 0.0, %v1366
        %v1368 = vpop.f32.mrb[0].mxu0
        %1369 = vmatprep.mubr.f32.mxu0 0.0
        %1370 = vmatmul.mubr.f32.gmra.mrb[0].mxu0 %v1268
        %v1371 = vpop.f32.mrb[0].mxu0
        %v1372 = vadd.f32 0.0, %v1371
        %v1373 = vpop.f32.mrb[0].mxu0
        %1374 = vdwg.mxu0
        %v1375 = vsub.f32 %v434, %v268
        %v1376 = vsub.f32 %v439, %v269
        %v1377 = vsub.f32 %v444, %v270
        %v1378 = vsub.f32 %v449, %v271
        %v1379 = vsub.f32 %v454, %v272
        %v1380 = vsub.f32 %v459, %v273
        %v1381 = vsub.f32 %v464, %v274
        %v1382 = vsub.f32 %v469, %v275
        %v1383 = vsub.f32 %v563, %v268
        %v1384 = vsub.f32 %v568, %v269
        %v1385 = vsub.f32 %v573, %v270
        %v1386 = vsub.f32 %v578, %v271
        %v1387 = vsub.f32 %v583, %v272
        %v1388 = vsub.f32 %v588, %v273
        %v1389 = vsub.f32 %v593, %v274
        %v1390 = vsub.f32 %v598, %v275
        %v1391 = vsub.f32 %v692, %v268
        %v1392 = vsub.f32 %v697, %v269
        %v1393 = vsub.f32 %v702, %v270
        %v1394 = vsub.f32 %v707, %v271
        %v1395 = vsub.f32 %v712, %v272
        %v1396 = vsub.f32 %v717, %v273
        %v1397 = vsub.f32 %v722, %v274
        %v1398 = vsub.f32 %v727, %v275
        %v1399 = vsub.f32 %v821, %v268
        %v1400 = vsub.f32 %v826, %v269
        %v1401 = vsub.f32 %v831, %v270
        %v1402 = vsub.f32 %v836, %v271
        %v1403 = vsub.f32 %v841, %v272
        %v1404 = vsub.f32 %v846, %v273
        %v1405 = vsub.f32 %v851, %v274
        %v1406 = vsub.f32 %v856, %v275
        %v1407 = vsub.f32 %v950, %v268
        %v1408 = vsub.f32 %v955, %v269
        %v1409 = vsub.f32 %v960, %v270
        %v1410 = vsub.f32 %v965, %v271
        %v1411 = vsub.f32 %v970, %v272
        %v1412 = vsub.f32 %v975, %v273
        %v1413 = vsub.f32 %v980, %v274
        %v1414 = vsub.f32 %v985, %v275
        %v1415 = vsub.f32 %v1079, %v268
        %v1416 = vsub.f32 %v1084, %v269
        %v1417 = vsub.f32 %v1089, %v270
        %v1418 = vsub.f32 %v1094, %v271
        %v1419 = vsub.f32 %v1099, %v272
        %v1420 = vsub.f32 %v1104, %v273
        %v1421 = vsub.f32 %v1109, %v274
        %v1422 = vsub.f32 %v1114, %v275
        %v1423 = vsub.f32 %v1208, %v268
        %v1424 = vsub.f32 %v1213, %v269
        %v1425 = vsub.f32 %v1218, %v270
        %v1426 = vsub.f32 %v1223, %v271
        %v1427 = vsub.f32 %v1228, %v272
        %v1428 = vsub.f32 %v1233, %v273
        %v1429 = vsub.f32 %v1238, %v274
        %v1430 = vsub.f32 %v1243, %v275
        %v1431 = vsub.f32 %v1337, %v268
        %v1432 = vsub.f32 %v1342, %v269
        %v1433 = vsub.f32 %v1347, %v270
        %v1434 = vsub.f32 %v1352, %v271
        %v1435 = vsub.f32 %v1357, %v272
        %v1436 = vsub.f32 %v1362, %v273
        %v1437 = vsub.f32 %v1367, %v274
        %v1438 = vsub.f32 %v1372, %v275
        %v1439 = vmul.f32 %v1375, %v1375
        %v1440 = vmul.f32 %v1376, %v1376
        %v1441 = vmul.f32 %v1377, %v1377
        %v1442 = vmul.f32 %v1378, %v1378
        %v1443 = vmul.f32 %v1379, %v1379
        %v1444 = vmul.f32 %v1380, %v1380
        %v1445 = vmul.f32 %v1381, %v1381
        %v1446 = vmul.f32 %v1382, %v1382
        %v1447 = vmul.f32 %v1383, %v1383
        %v1448 = vmul.f32 %v1384, %v1384
        %v1449 = vmul.f32 %v1385, %v1385
        %v1450 = vmul.f32 %v1386, %v1386
        %v1451 = vmul.f32 %v1387, %v1387
        %v1452 = vmul.f32 %v1388, %v1388
        %v1453 = vmul.f32 %v1389, %v1389
        %v1454 = vmul.f32 %v1390, %v1390
        %v1455 = vmul.f32 %v1391, %v1391
        %v1456 = vmul.f32 %v1392, %v1392
        %v1457 = vmul.f32 %v1393, %v1393
        %v1458 = vmul.f32 %v1394, %v1394
        %v1459 = vmul.f32 %v1395, %v1395
        %v1460 = vmul.f32 %v1396, %v1396
        %v1461 = vmul.f32 %v1397, %v1397
        %v1462 = vmul.f32 %v1398, %v1398
        %v1463 = vmul.f32 %v1399, %v1399
        %v1464 = vmul.f32 %v1400, %v1400
        %v1465 = vmul.f32 %v1401, %v1401
        %v1466 = vmul.f32 %v1402, %v1402
        %v1467 = vmul.f32 %v1403, %v1403
        %v1468 = vmul.f32 %v1404, %v1404
        %v1469 = vmul.f32 %v1405, %v1405
        %v1470 = vmul.f32 %v1406, %v1406
        %v1471 = vmul.f32 %v1407, %v1407
        %v1472 = vmul.f32 %v1408, %v1408
        %v1473 = vmul.f32 %v1409, %v1409
        %v1474 = vmul.f32 %v1410, %v1410
        %v1475 = vmul.f32 %v1411, %v1411
        %v1476 = vmul.f32 %v1412, %v1412
        %v1477 = vmul.f32 %v1413, %v1413
        %v1478 = vmul.f32 %v1414, %v1414
        %v1479 = vmul.f32 %v1415, %v1415
        %v1480 = vmul.f32 %v1416, %v1416
        %v1481 = vmul.f32 %v1417, %v1417
        %v1482 = vmul.f32 %v1418, %v1418
        %v1483 = vmul.f32 %v1419, %v1419
        %v1484 = vmul.f32 %v1420, %v1420
        %v1485 = vmul.f32 %v1421, %v1421
        %v1486 = vmul.f32 %v1422, %v1422
        %v1487 = vmul.f32 %v1423, %v1423
        %v1488 = vmul.f32 %v1424, %v1424
        %v1489 = vmul.f32 %v1425, %v1425
        %v1490 = vmul.f32 %v1426, %v1426
        %v1491 = vmul.f32 %v1427, %v1427
        %v1492 = vmul.f32 %v1428, %v1428
        %v1493 = vmul.f32 %v1429, %v1429
        %v1494 = vmul.f32 %v1430, %v1430
        %v1495 = vmul.f32 %v1431, %v1431
        %v1496 = vmul.f32 %v1432, %v1432
        %v1497 = vmul.f32 %v1433, %v1433
        %v1498 = vmul.f32 %v1434, %v1434
        %v1499 = vmul.f32 %v1435, %v1435
        %v1500 = vmul.f32 %v1436, %v1436
        %v1501 = vmul.f32 %v1437, %v1437
        %v1502 = vmul.f32 %v1438, %v1438
        %v1503 = vsel %vm342, %v1439, 0.0
        %1504 = vadd.xlane.f32.xlu0 %v1503
        %v1505 = vpop.xlane.xlu0 %1504
        %v1506 = vsel %vm342, %v1440, 0.0
        %1507 = vadd.xlane.f32.xlu0 %v1506
        %v1508 = vpop.xlane.xlu0 %1507
        %v1509 = vsel %vm342, %v1441, 0.0
        %1510 = vadd.xlane.f32.xlu0 %v1509
        %v1511 = vpop.xlane.xlu0 %1510
        %v1512 = vsel %vm342, %v1442, 0.0
        %1513 = vadd.xlane.f32.xlu0 %v1512
        %v1514 = vpop.xlane.xlu0 %1513
        %v1515 = vsel %vm342, %v1443, 0.0
        %1516 = vadd.xlane.f32.xlu0 %v1515
        %v1517 = vpop.xlane.xlu0 %1516
        %v1518 = vsel %vm342, %v1444, 0.0
        %1519 = vadd.xlane.f32.xlu0 %v1518
        %v1520 = vpop.xlane.xlu0 %1519
        %v1521 = vsel %vm342, %v1445, 0.0
        %1522 = vadd.xlane.f32.xlu0 %v1521
        %v1523 = vpop.xlane.xlu0 %1522
        %v1524 = vsel %vm342, %v1446, 0.0
        %1525 = vadd.xlane.f32.xlu0 %v1524
        %v1526 = vpop.xlane.xlu0 %1525
        %v1527 = vsel %vm342, %v1447, 0.0
        %1528 = vadd.xlane.f32.xlu0 %v1527
        %v1529 = vpop.xlane.xlu0 %1528
        %v1530 = vsel %vm342, %v1448, 0.0
        %1531 = vadd.xlane.f32.xlu0 %v1530
        %v1532 = vpop.xlane.xlu0 %1531
        %v1533 = vsel %vm342, %v1449, 0.0
        %1534 = vadd.xlane.f32.xlu0 %v1533
        %v1535 = vpop.xlane.xlu0 %1534
        %v1536 = vsel %vm342, %v1450, 0.0
        %1537 = vadd.xlane.f32.xlu0 %v1536
        %v1538 = vpop.xlane.xlu0 %1537
        %v1539 = vsel %vm342, %v1451, 0.0
        %1540 = vadd.xlane.f32.xlu0 %v1539
        %v1541 = vpop.xlane.xlu0 %1540
        %v1542 = vsel %vm342, %v1452, 0.0
        %1543 = vadd.xlane.f32.xlu0 %v1542
        %v1544 = vpop.xlane.xlu0 %1543
        %v1545 = vsel %vm342, %v1453, 0.0
        %1546 = vadd.xlane.f32.xlu0 %v1545
        %v1547 = vpop.xlane.xlu0 %1546
        %v1548 = vsel %vm342, %v1454, 0.0
        %1549 = vadd.xlane.f32.xlu0 %v1548
        %v1550 = vpop.xlane.xlu0 %1549
        %v1551 = vsel %vm342, %v1455, 0.0
        %1552 = vadd.xlane.f32.xlu0 %v1551
        %v1553 = vpop.xlane.xlu0 %1552
        %v1554 = vsel %vm342, %v1456, 0.0
        %1555 = vadd.xlane.f32.xlu0 %v1554
        %v1556 = vpop.xlane.xlu0 %1555
        %v1557 = vsel %vm342, %v1457, 0.0
        %1558 = vadd.xlane.f32.xlu0 %v1557
        %v1559 = vpop.xlane.xlu0 %1558
        %v1560 = vsel %vm342, %v1458, 0.0
        %1561 = vadd.xlane.f32.xlu0 %v1560
        %v1562 = vpop.xlane.xlu0 %1561
        %v1563 = vsel %vm342, %v1459, 0.0
        %1564 = vadd.xlane.f32.xlu0 %v1563
        %v1565 = vpop.xlane.xlu0 %1564
        %v1566 = vsel %vm342, %v1460, 0.0
        %1567 = vadd.xlane.f32.xlu0 %v1566
        %v1568 = vpop.xlane.xlu0 %1567
        %v1569 = vsel %vm342, %v1461, 0.0
        %1570 = vadd.xlane.f32.xlu0 %v1569
        %v1571 = vpop.xlane.xlu0 %1570
        %v1572 = vsel %vm342, %v1462, 0.0
        %1573 = vadd.xlane.f32.xlu0 %v1572
        %v1574 = vpop.xlane.xlu0 %1573
        %v1575 = vsel %vm342, %v1463, 0.0
        %1576 = vadd.xlane.f32.xlu0 %v1575
        %v1577 = vpop.xlane.xlu0 %1576
        %v1578 = vsel %vm342, %v1464, 0.0
        %1579 = vadd.xlane.f32.xlu0 %v1578
        %v1580 = vpop.xlane.xlu0 %1579
        %v1581 = vsel %vm342, %v1465, 0.0
        %1582 = vadd.xlane.f32.xlu0 %v1581
        %v1583 = vpop.xlane.xlu0 %1582
        %v1584 = vsel %vm342, %v1466, 0.0
        %1585 = vadd.xlane.f32.xlu0 %v1584
        %v1586 = vpop.xlane.xlu0 %1585
        %v1587 = vsel %vm342, %v1467, 0.0
        %1588 = vadd.xlane.f32.xlu0 %v1587
        %v1589 = vpop.xlane.xlu0 %1588
        %v1590 = vsel %vm342, %v1468, 0.0
        %1591 = vadd.xlane.f32.xlu0 %v1590
        %v1592 = vpop.xlane.xlu0 %1591
        %v1593 = vsel %vm342, %v1469, 0.0
        %1594 = vadd.xlane.f32.xlu0 %v1593
        %v1595 = vpop.xlane.xlu0 %1594
        %v1596 = vsel %vm342, %v1470, 0.0
        %1597 = vadd.xlane.f32.xlu0 %v1596
        %v1598 = vpop.xlane.xlu0 %1597
        %v1599 = vsel %vm342, %v1471, 0.0
        %1600 = vadd.xlane.f32.xlu0 %v1599
        %v1601 = vpop.xlane.xlu0 %1600
        %v1602 = vsel %vm342, %v1472, 0.0
        %1603 = vadd.xlane.f32.xlu0 %v1602
        %v1604 = vpop.xlane.xlu0 %1603
        %v1605 = vsel %vm342, %v1473, 0.0
        %1606 = vadd.xlane.f32.xlu0 %v1605
        %v1607 = vpop.xlane.xlu0 %1606
        %v1608 = vsel %vm342, %v1474, 0.0
        %1609 = vadd.xlane.f32.xlu0 %v1608
        %v1610 = vpop.xlane.xlu0 %1609
        %v1611 = vsel %vm342, %v1475, 0.0
        %1612 = vadd.xlane.f32.xlu0 %v1611
        %v1613 = vpop.xlane.xlu0 %1612
        %v1614 = vsel %vm342, %v1476, 0.0
        %1615 = vadd.xlane.f32.xlu0 %v1614
        %v1616 = vpop.xlane.xlu0 %1615
        %v1617 = vsel %vm342, %v1477, 0.0
        %1618 = vadd.xlane.f32.xlu0 %v1617
        %v1619 = vpop.xlane.xlu0 %1618
        %v1620 = vsel %vm342, %v1478, 0.0
        %1621 = vadd.xlane.f32.xlu0 %v1620
        %v1622 = vpop.xlane.xlu0 %1621
        %v1623 = vsel %vm342, %v1479, 0.0
        %1624 = vadd.xlane.f32.xlu0 %v1623
        %v1625 = vpop.xlane.xlu0 %1624
        %v1626 = vsel %vm342, %v1480, 0.0
        %1627 = vadd.xlane.f32.xlu0 %v1626
        %v1628 = vpop.xlane.xlu0 %1627
        %v1629 = vsel %vm342, %v1481, 0.0
        %1630 = vadd.xlane.f32.xlu0 %v1629
        %v1631 = vpop.xlane.xlu0 %1630
        %v1632 = vsel %vm342, %v1482, 0.0
        %1633 = vadd.xlane.f32.xlu0 %v1632
        %v1634 = vpop.xlane.xlu0 %1633
        %v1635 = vsel %vm342, %v1483, 0.0
        %1636 = vadd.xlane.f32.xlu0 %v1635
        %v1637 = vpop.xlane.xlu0 %1636
        %v1638 = vsel %vm342, %v1484, 0.0
        %1639 = vadd.xlane.f32.xlu0 %v1638
        %v1640 = vpop.xlane.xlu0 %1639
        %v1641 = vsel %vm342, %v1485, 0.0
        %1642 = vadd.xlane.f32.xlu0 %v1641
        %v1643 = vpop.xlane.xlu0 %1642
        %v1644 = vsel %vm342, %v1486, 0.0
        %1645 = vadd.xlane.f32.xlu0 %v1644
        %v1646 = vpop.xlane.xlu0 %1645
        %v1647 = vsel %vm342, %v1487, 0.0
        %1648 = vadd.xlane.f32.xlu0 %v1647
        %v1649 = vpop.xlane.xlu0 %1648
        %v1650 = vsel %vm342, %v1488, 0.0
        %1651 = vadd.xlane.f32.xlu0 %v1650
        %v1652 = vpop.xlane.xlu0 %1651
        %v1653 = vsel %vm342, %v1489, 0.0
        %1654 = vadd.xlane.f32.xlu0 %v1653
        %v1655 = vpop.xlane.xlu0 %1654
        %v1656 = vsel %vm342, %v1490, 0.0
        %1657 = vadd.xlane.f32.xlu0 %v1656
        %v1658 = vpop.xlane.xlu0 %1657
        %v1659 = vsel %vm342, %v1491, 0.0
        %1660 = vadd.xlane.f32.xlu0 %v1659
        %v1661 = vpop.xlane.xlu0 %1660
        %v1662 = vsel %vm342, %v1492, 0.0
        %1663 = vadd.xlane.f32.xlu0 %v1662
        %v1664 = vpop.xlane.xlu0 %1663
        %v1665 = vsel %vm342, %v1493, 0.0
        %1666 = vadd.xlane.f32.xlu0 %v1665
        %v1667 = vpop.xlane.xlu0 %1666
        %v1668 = vsel %vm342, %v1494, 0.0
        %1669 = vadd.xlane.f32.xlu0 %v1668
        %v1670 = vpop.xlane.xlu0 %1669
        %v1671 = vsel %vm342, %v1495, 0.0
        %1672 = vadd.xlane.f32.xlu0 %v1671
        %v1673 = vpop.xlane.xlu0 %1672
        %v1674 = vsel %vm342, %v1496, 0.0
        %1675 = vadd.xlane.f32.xlu0 %v1674
        %v1676 = vpop.xlane.xlu0 %1675
        %v1677 = vsel %vm342, %v1497, 0.0
        %1678 = vadd.xlane.f32.xlu0 %v1677
        %v1679 = vpop.xlane.xlu0 %1678
        %v1680 = vsel %vm342, %v1498, 0.0
        %1681 = vadd.xlane.f32.xlu0 %v1680
        %v1682 = vpop.xlane.xlu0 %1681
        %v1683 = vsel %vm342, %v1499, 0.0
        %1684 = vadd.xlane.f32.xlu0 %v1683
        %v1685 = vpop.xlane.xlu0 %1684
        %v1686 = vsel %vm342, %v1500, 0.0
        %1687 = vadd.xlane.f32.xlu0 %v1686
        %v1688 = vpop.xlane.xlu0 %1687
        %v1689 = vsel %vm342, %v1501, 0.0
        %1690 = vadd.xlane.f32.xlu0 %v1689
        %v1691 = vpop.xlane.xlu0 %1690
        %v1692 = vsel %vm342, %v1502, 0.0
        %1693 = vadd.xlane.f32.xlu0 %v1692
        %v1694 = vpop.xlane.xlu0 %1693
        %v1759 = vlaneseq
        %v1760 = vshrl.u32 %v1759, 7
        %v1761 = vsub.s32 %v229, %v1760
        %v1762 = vrot.slane %v1505, %v1761
        %v1763 = vadd.s32 %v229, 4294967288
        %v1764 = vlaneseq
        %v1765 = vshrl.u32 %v1764, 7
        %v1766 = vsub.s32 %v1763, %v1765
        %v1767 = vrot.slane %v1508, %v1766
        %vm1768 = vcmask 130112
        %v1769 = vsel %vm1768, %v1767, %v1762
        %v1770 = vadd.s32 %v229, 4294967280
        %v1771 = vlaneseq
        %v1772 = vshrl.u32 %v1771, 7
        %v1773 = vsub.s32 %v1770, %v1772
        %v1774 = vrot.slane %v1511, %v1773
        %vm1775 = vcmask 195712
        %v1776 = vsel %vm1775, %v1774, %v1769
        %v1777 = vadd.s32 %v229, 4294967272
        %v1778 = vlaneseq
        %v1779 = vshrl.u32 %v1778, 7
        %v1780 = vsub.s32 %v1777, %v1779
        %v1781 = vrot.slane %v1514, %v1780
        %vm1782 = vcmask 261312
        %v1783 = vsel %vm1782, %v1781, %v1776
        %v1784 = vadd.s32 %v229, 4294967264
        %v1785 = vlaneseq
        %v1786 = vshrl.u32 %v1785, 7
        %v1787 = vsub.s32 %v1784, %v1786
        %v1788 = vrot.slane %v1517, %v1787
        %vm1789 = vcmask 326912
        %v1790 = vsel %vm1789, %v1788, %v1783
        %v1791 = vadd.s32 %v229, 4294967256
        %v1792 = vlaneseq
        %v1793 = vshrl.u32 %v1792, 7
        %v1794 = vsub.s32 %v1791, %v1793
        %v1795 = vrot.slane %v1520, %v1794
        %vm1796 = vcmask 392512
        %v1797 = vsel %vm1796, %v1795, %v1790
        %v1798 = vadd.s32 %v229, 4294967248
        %v1799 = vlaneseq
        %v1800 = vshrl.u32 %v1799, 7
        %v1801 = vsub.s32 %v1798, %v1800
        %v1802 = vrot.slane %v1523, %v1801
        %vm1803 = vcmask 458112
        %v1804 = vsel %vm1803, %v1802, %v1797
        %v1805 = vadd.s32 %v229, 4294967240
        %v1806 = vlaneseq
        %v1807 = vshrl.u32 %v1806, 7
        %v1808 = vsub.s32 %v1805, %v1807
        %v1809 = vrot.slane %v1526, %v1808
        %vm1810 = vcmask 523712
        %v1811 = vsel %vm1810, %v1809, %v1804
        %v1812 = vlaneseq
        %v1813 = vshrl.u32 %v1812, 7
        %v1814 = vsub.s32 %v229, %v1813
        %v1815 = vrot.slane %v1529, %v1814
        %v1816 = vlaneseq
        %v1817 = vshrl.u32 %v1816, 7
        %v1818 = vsub.s32 %v1763, %v1817
        %v1819 = vrot.slane %v1532, %v1818
        %v1820 = vsel %vm1768, %v1819, %v1815
        %v1821 = vlaneseq
        %v1822 = vshrl.u32 %v1821, 7
        %v1823 = vsub.s32 %v1770, %v1822
        %v1824 = vrot.slane %v1535, %v1823
        %v1825 = vsel %vm1775, %v1824, %v1820
        %v1826 = vlaneseq
        %v1827 = vshrl.u32 %v1826, 7
        %v1828 = vsub.s32 %v1777, %v1827
        %v1829 = vrot.slane %v1538, %v1828
        %v1830 = vsel %vm1782, %v1829, %v1825
        %v1831 = vlaneseq
        %v1832 = vshrl.u32 %v1831, 7
        %v1833 = vsub.s32 %v1784, %v1832
        %v1834 = vrot.slane %v1541, %v1833
        %v1835 = vsel %vm1789, %v1834, %v1830
        %v1836 = vlaneseq
        %v1837 = vshrl.u32 %v1836, 7
        %v1838 = vsub.s32 %v1791, %v1837
        %v1839 = vrot.slane %v1544, %v1838
        %v1840 = vsel %vm1796, %v1839, %v1835
        %v1841 = vlaneseq
        %v1842 = vshrl.u32 %v1841, 7
        %v1843 = vsub.s32 %v1798, %v1842
        %v1844 = vrot.slane %v1547, %v1843
        %v1845 = vsel %vm1803, %v1844, %v1840
        %v1846 = vlaneseq
        %v1847 = vshrl.u32 %v1846, 7
        %v1848 = vsub.s32 %v1805, %v1847
        %v1849 = vrot.slane %v1550, %v1848
        %v1850 = vsel %vm1810, %v1849, %v1845
        %v1851 = vlaneseq
        %v1852 = vshrl.u32 %v1851, 7
        %v1853 = vsub.s32 %v229, %v1852
        %v1854 = vrot.slane %v1553, %v1853
        %v1855 = vlaneseq
        %v1856 = vshrl.u32 %v1855, 7
        %v1857 = vsub.s32 %v1763, %v1856
        %v1858 = vrot.slane %v1556, %v1857
        %v1859 = vsel %vm1768, %v1858, %v1854
        %v1860 = vlaneseq
        %v1861 = vshrl.u32 %v1860, 7
        %v1862 = vsub.s32 %v1770, %v1861
        %v1863 = vrot.slane %v1559, %v1862
        %v1864 = vsel %vm1775, %v1863, %v1859
        %v1865 = vlaneseq
        %v1866 = vshrl.u32 %v1865, 7
        %v1867 = vsub.s32 %v1777, %v1866
        %v1868 = vrot.slane %v1562, %v1867
        %v1869 = vsel %vm1782, %v1868, %v1864
        %v1870 = vlaneseq
        %v1871 = vshrl.u32 %v1870, 7
        %v1872 = vsub.s32 %v1784, %v1871
        %v1873 = vrot.slane %v1565, %v1872
        %v1874 = vsel %vm1789, %v1873, %v1869
        %v1875 = vlaneseq
        %v1876 = vshrl.u32 %v1875, 7
        %v1877 = vsub.s32 %v1791, %v1876
        %v1878 = vrot.slane %v1568, %v1877
        %v1879 = vsel %vm1796, %v1878, %v1874
        %v1880 = vlaneseq
        %v1881 = vshrl.u32 %v1880, 7
        %v1882 = vsub.s32 %v1798, %v1881
        %v1883 = vrot.slane %v1571, %v1882
        %v1884 = vsel %vm1803, %v1883, %v1879
        %v1885 = vlaneseq
        %v1886 = vshrl.u32 %v1885, 7
        %v1887 = vsub.s32 %v1805, %v1886
        %v1888 = vrot.slane %v1574, %v1887
        %v1889 = vsel %vm1810, %v1888, %v1884
        %v1890 = vlaneseq
        %v1891 = vshrl.u32 %v1890, 7
        %v1892 = vsub.s32 %v229, %v1891
        %v1893 = vrot.slane %v1577, %v1892
        %v1894 = vlaneseq
        %v1895 = vshrl.u32 %v1894, 7
        %v1896 = vsub.s32 %v1763, %v1895
        %v1897 = vrot.slane %v1580, %v1896
        %v1898 = vsel %vm1768, %v1897, %v1893
        %v1899 = vlaneseq
        %v1900 = vshrl.u32 %v1899, 7
        %v1901 = vsub.s32 %v1770, %v1900
        %v1902 = vrot.slane %v1583, %v1901
        %v1903 = vsel %vm1775, %v1902, %v1898
        %v1904 = vlaneseq
        %v1905 = vshrl.u32 %v1904, 7
        %v1906 = vsub.s32 %v1777, %v1905
        %v1907 = vrot.slane %v1586, %v1906
        %v1908 = vsel %vm1782, %v1907, %v1903
        %v1909 = vlaneseq
        %v1910 = vshrl.u32 %v1909, 7
        %v1911 = vsub.s32 %v1784, %v1910
        %v1912 = vrot.slane %v1589, %v1911
        %v1913 = vsel %vm1789, %v1912, %v1908
        %v1914 = vlaneseq
        %v1915 = vshrl.u32 %v1914, 7
        %v1916 = vsub.s32 %v1791, %v1915
        %v1917 = vrot.slane %v1592, %v1916
        %v1918 = vsel %vm1796, %v1917, %v1913
        %v1919 = vlaneseq
        %v1920 = vshrl.u32 %v1919, 7
        %v1921 = vsub.s32 %v1798, %v1920
        %v1922 = vrot.slane %v1595, %v1921
        %v1923 = vsel %vm1803, %v1922, %v1918
        %v1924 = vlaneseq
        %v1925 = vshrl.u32 %v1924, 7
        %v1926 = vsub.s32 %v1805, %v1925
        %v1927 = vrot.slane %v1598, %v1926
        %v1928 = vsel %vm1810, %v1927, %v1923
        %v1929 = vlaneseq
        %v1930 = vshrl.u32 %v1929, 7
        %v1931 = vsub.s32 %v229, %v1930
        %v1932 = vrot.slane %v1601, %v1931
        %v1933 = vlaneseq
        %v1934 = vshrl.u32 %v1933, 7
        %v1935 = vsub.s32 %v1763, %v1934
        %v1936 = vrot.slane %v1604, %v1935
        %v1937 = vsel %vm1768, %v1936, %v1932
        %v1938 = vlaneseq
        %v1939 = vshrl.u32 %v1938, 7
        %v1940 = vsub.s32 %v1770, %v1939
        %v1941 = vrot.slane %v1607, %v1940
        %v1942 = vsel %vm1775, %v1941, %v1937
        %v1943 = vlaneseq
        %v1944 = vshrl.u32 %v1943, 7
        %v1945 = vsub.s32 %v1777, %v1944
        %v1946 = vrot.slane %v1610, %v1945
        %v1947 = vsel %vm1782, %v1946, %v1942
        %v1948 = vlaneseq
        %v1949 = vshrl.u32 %v1948, 7
        %v1950 = vsub.s32 %v1784, %v1949
        %v1951 = vrot.slane %v1613, %v1950
        %v1952 = vsel %vm1789, %v1951, %v1947
        %v1953 = vlaneseq
        %v1954 = vshrl.u32 %v1953, 7
        %v1955 = vsub.s32 %v1791, %v1954
        %v1956 = vrot.slane %v1616, %v1955
        %v1957 = vsel %vm1796, %v1956, %v1952
        %v1958 = vlaneseq
        %v1959 = vshrl.u32 %v1958, 7
        %v1960 = vsub.s32 %v1798, %v1959
        %v1961 = vrot.slane %v1619, %v1960
        %v1962 = vsel %vm1803, %v1961, %v1957
        %v1963 = vlaneseq
        %v1964 = vshrl.u32 %v1963, 7
        %v1965 = vsub.s32 %v1805, %v1964
        %v1966 = vrot.slane %v1622, %v1965
        %v1967 = vsel %vm1810, %v1966, %v1962
        %v1968 = vlaneseq
        %v1969 = vshrl.u32 %v1968, 7
        %v1970 = vsub.s32 %v229, %v1969
        %v1971 = vrot.slane %v1625, %v1970
        %v1972 = vlaneseq
        %v1973 = vshrl.u32 %v1972, 7
        %v1974 = vsub.s32 %v1763, %v1973
        %v1975 = vrot.slane %v1628, %v1974
        %v1976 = vsel %vm1768, %v1975, %v1971
        %v1977 = vlaneseq
        %v1978 = vshrl.u32 %v1977, 7
        %v1979 = vsub.s32 %v1770, %v1978
        %v1980 = vrot.slane %v1631, %v1979
        %v1981 = vsel %vm1775, %v1980, %v1976
        %v1982 = vlaneseq
        %v1983 = vshrl.u32 %v1982, 7
        %v1984 = vsub.s32 %v1777, %v1983
        %v1985 = vrot.slane %v1634, %v1984
        %v1986 = vsel %vm1782, %v1985, %v1981
        %v1987 = vlaneseq
        %v1988 = vshrl.u32 %v1987, 7
        %v1989 = vsub.s32 %v1784, %v1988
        %v1990 = vrot.slane %v1637, %v1989
        %v1991 = vsel %vm1789, %v1990, %v1986
        %v1992 = vlaneseq
        %v1993 = vshrl.u32 %v1992, 7
        %v1994 = vsub.s32 %v1791, %v1993
        %v1995 = vrot.slane %v1640, %v1994
        %v1996 = vsel %vm1796, %v1995, %v1991
        %v1997 = vlaneseq
        %v1998 = vshrl.u32 %v1997, 7
        %v1999 = vsub.s32 %v1798, %v1998
        %v2000 = vrot.slane %v1643, %v1999
        %v2001 = vsel %vm1803, %v2000, %v1996
        %v2002 = vlaneseq
        %v2003 = vshrl.u32 %v2002, 7
        %v2004 = vsub.s32 %v1805, %v2003
        %v2005 = vrot.slane %v1646, %v2004
        %v2006 = vsel %vm1810, %v2005, %v2001
        %v2007 = vlaneseq
        %v2008 = vshrl.u32 %v2007, 7
        %v2009 = vsub.s32 %v229, %v2008
        %v2010 = vrot.slane %v1649, %v2009
        %v2011 = vlaneseq
        %v2012 = vshrl.u32 %v2011, 7
        %v2013 = vsub.s32 %v1763, %v2012
        %v2014 = vrot.slane %v1652, %v2013
        %v2015 = vsel %vm1768, %v2014, %v2010
        %v2016 = vlaneseq
        %v2017 = vshrl.u32 %v2016, 7
        %v2018 = vsub.s32 %v1770, %v2017
        %v2019 = vrot.slane %v1655, %v2018
        %v2020 = vsel %vm1775, %v2019, %v2015
        %v2021 = vlaneseq
        %v2022 = vshrl.u32 %v2021, 7
        %v2023 = vsub.s32 %v1777, %v2022
        %v2024 = vrot.slane %v1658, %v2023
        %v2025 = vsel %vm1782, %v2024, %v2020
        %v2026 = vlaneseq
        %v2027 = vshrl.u32 %v2026, 7
        %v2028 = vsub.s32 %v1784, %v2027
        %v2029 = vrot.slane %v1661, %v2028
        %v2030 = vsel %vm1789, %v2029, %v2025
        %v2031 = vlaneseq
        %v2032 = vshrl.u32 %v2031, 7
        %v2033 = vsub.s32 %v1791, %v2032
        %v2034 = vrot.slane %v1664, %v2033
        %v2035 = vsel %vm1796, %v2034, %v2030
        %v2036 = vlaneseq
        %v2037 = vshrl.u32 %v2036, 7
        %v2038 = vsub.s32 %v1798, %v2037
        %v2039 = vrot.slane %v1667, %v2038
        %v2040 = vsel %vm1803, %v2039, %v2035
        %v2041 = vlaneseq
        %v2042 = vshrl.u32 %v2041, 7
        %v2043 = vsub.s32 %v1805, %v2042
        %v2044 = vrot.slane %v1670, %v2043
        %v2045 = vsel %vm1810, %v2044, %v2040
        %v2046 = vlaneseq
        %v2047 = vshrl.u32 %v2046, 7
        %v2048 = vsub.s32 %v229, %v2047
        %v2049 = vrot.slane %v1673, %v2048
        %v2050 = vlaneseq
        %v2051 = vshrl.u32 %v2050, 7
        %v2052 = vsub.s32 %v1763, %v2051
        %v2053 = vrot.slane %v1676, %v2052
        %v2054 = vsel %vm1768, %v2053, %v2049
        %v2055 = vlaneseq
        %v2056 = vshrl.u32 %v2055, 7
        %v2057 = vsub.s32 %v1770, %v2056
        %v2058 = vrot.slane %v1679, %v2057
        %v2059 = vsel %vm1775, %v2058, %v2054
        %v2060 = vlaneseq
        %v2061 = vshrl.u32 %v2060, 7
        %v2062 = vsub.s32 %v1777, %v2061
        %v2063 = vrot.slane %v1682, %v2062
        %v2064 = vsel %vm1782, %v2063, %v2059
        %v2065 = vlaneseq
        %v2066 = vshrl.u32 %v2065, 7
        %v2067 = vsub.s32 %v1784, %v2066
        %v2068 = vrot.slane %v1685, %v2067
        %v2069 = vsel %vm1789, %v2068, %v2064
        %v2070 = vlaneseq
        %v2071 = vshrl.u32 %v2070, 7
        %v2072 = vsub.s32 %v1791, %v2071
        %v2073 = vrot.slane %v1688, %v2072
        %v2074 = vsel %vm1796, %v2073, %v2069
        %v2075 = vlaneseq
        %v2076 = vshrl.u32 %v2075, 7
        %v2077 = vsub.s32 %v1798, %v2076
        %v2078 = vrot.slane %v1691, %v2077
        %v2079 = vsel %vm1803, %v2078, %v2074
        %v2080 = vlaneseq
        %v2081 = vshrl.u32 %v2080, 7
        %v2082 = vsub.s32 %v1805, %v2081
        %v2083 = vrot.slane %v1694, %v2082
        %v2084 = vsel %vm1810, %v2083, %v2079
        %vm2085 = vcmask 1041409
        %v2086 = vsel %vm2085, %v1850, %v1811
        %vm2087 = vcmask 1042434
        %v2088 = vsel %vm2087, %v1889, %v2086
        %vm2089 = vcmask 1043459
        %v2090 = vsel %vm2089, %v1928, %v2088
        %vm2091 = vcmask 1044484
        %v2092 = vsel %vm2091, %v1967, %v2090
        %vm2093 = vcmask 1045509
        %v2094 = vsel %vm2093, %v2006, %v2092
        %vm2095 = vcmask 1046534
        %v2096 = vsel %vm2095, %v2045, %v2094
        %vm2097 = vcmask 1047559
        %v2098 = vsel %vm2097, %v2084, %v2096
        %v2100 = vsel %vm342, %v2098, 0.0
        %2101 = vadd.xlane.f32.xlu0 %v2100
        %v2102 = vpop.xlane.xlu0 %2101
        %s2103 = sadd.s32 %s225, 0
        %v2104 = vstv %s2103
        %v2105 = vadd.s32 %v231, %v2104
        %vm2106 = vcmp.lt.s32.totalorder %v2105, 16
        %v2107 = vsel %vm2106, %v2102, -inf
        %v2108 = vrot.slane %v2107, 4
        %v2109 = vmax.f32 %v2107, %v2108
        %v2110 = vrot.slane %v2109, 2
        %v2111 = vmax.f32 %v2109, %v2110
        %v2112 = vrot.slane %v2111, 1
        %v2113 = vmax.f32 %v2111, %v2112
        %s2114 = vtos %v2113
        %vm2115 = vcmp.eq.s32.totalorder %v229, 0
        %vm2116 = vcmp.eq.s32.totalorder %v229, 1
        %v2117 = vstv %s2114
        %v2118 = vsel %vm2116, %v2117, 0.0
        %v2119 = vstv %s252
        %v2120 = vsel %vm2115, %v2119, %v2118
        %2121 = vst [vmem:[%s215] sm:$0xff] %v2120
        %s2122 = sand.u32 %s106, 1
        %s2123 = scalar_lea.sflag [#allocation4], %s2122
        %s2124 = sand.u32 %s106, 1
        %s2125 = smul.addr %s2124, 8
        %s2126 = scalar_lea.vmem [#allocation5], %s2125
        // Predicated region
        $region37: #{tpu_custom_call.1} parent=31 // pred_check
          %p2127 = pneg %p116
        $region38: #{tpu_custom_call.1} parent=31 // pred_check_branch
          %2129 = sbr.rel (%p2127) target = $region40
        $region39: #{tpu_custom_call.1} parent=31 // pred_region
          %s2131 = ssub.s32 128, 128
          %2132 = vsyncadd %s2123, %s2131
          %s2133 = smul.addr %s20, 128
          %s2134 = scalar_lea.hbm %s3, %s2133
          %s2136 = sshll.u32 %s2126, 4
          %s2137 = int_to_ptr.vmem [resolvable:$true] %s2136
          %2139 = dma.vmem_to_hbm [thread:$0]  %s2137, 128, %s2134, %s2123
        $region40: #{tpu_custom_call.1} parent=31 // pred_fallthru
          _
      $region32: #{tpu_custom_call.1} parent=5 // pred_fallthru
        _
      %p2140 = scmp.le.s32.totalorder 2, %s15
      // Predicated region
      $region41: #{tpu_custom_call.1} parent=5 // pred_check
        %p2141 = pneg %p2140
      $region42: #{tpu_custom_call.1} parent=5 // pred_check_branch
        %2143 = sbr.rel (%p2141) target = $region44
      $region43: #{tpu_custom_call.1} parent=5 // pred_region
        %s2144 = ssub.s32 %s15, 2
        // Predicated region
        $region45: #{tpu_custom_call.1} parent=43 // pred_check
          %p2145 = pneg %p122
        $region46: #{tpu_custom_call.1} parent=43 // pred_check_branch
          %2147 = sbr.rel (%p2145) target = $region48
        $region47: #{tpu_custom_call.1} parent=43 // pred_region
          %s2148 = sand.u32 %s107, 1
          %s2149 = scalar_lea.sflag [#allocation4], %s2148
          %s2150 = sand.u32 %s107, 1
          %s2151 = smul.addr %s2150, 8
          %s2152 = scalar_lea.vmem [#allocation5], %s2151
          %2153 = dma.done %s2149, 128
        $region48: #{tpu_custom_call.1} parent=43 // pred_fallthru
          _
      $region44: #{tpu_custom_call.1} parent=5 // pred_fallthru
        _
    $region6: #{tpu_custom_call.1} parent=1 // loop_footer
      %s19 = sadd.s32 1, %s15
    $region7: #{tpu_custom_call.1} parent=1 // loop_footer_branch
      %14 = sbr.rel target = $region3
    $region8: #{tpu_custom_call.1} parent=1 // loop_exit
      _
    %2154 = vsyncpa [#allocation3], 1
    %s2155 = scalar_lea.sflag [#allocation3], 1
    %2156 = vsyncpa %s2155, 1
    %2157 = vsyncpa [#allocation4], 1
    %s2158 = scalar_lea.sflag [#allocation4], 1
    %2159 = vsyncpa %s2158, 1

</llo_original>
